<compile_context>
chip_gen: v7x
topology: tpu7x:2x2x1
jax: 0.10.0
libtpu: 0.0.40
codegen_flags: <defaults>
</compile_context>

<pallas_src>
import jax
import jax.numpy as jnp
from jax import lax
from jax.experimental import pallas as pl
from jax.experimental.pallas import tpu as pltpu


# --------------------------------------------------------------------------
# Fused kernel (one grid step == one batch element, everything in VMEM)
# --------------------------------------------------------------------------

def _rgcn_fused_kernel(x_ref, fg_ref, bg_ref,
                       wl1_ref, wsim2_ref, wst2_ref, wsim3_ref, wst3_ref,
                       o_ref):
    C = x_ref.shape[-1]
    Cout = o_ref.shape[-1]

    x = x_ref[0]           # (Nr, C)   f32
    fg = fg_ref[0]         # (Nr, Nr)
    bg = bg_ref[0]         # (Nr, Nr)

    relu = lambda v: jnp.maximum(v, 0.0)

    # ---- layer-1 fused matmul: [sim1 | sim2 | sim_gc1 | st_gc1_f | st_gc1_b]
    l1 = jnp.dot(x, wl1_ref[...], preferred_element_type=jnp.float32)  # (Nr, 5C)
    s1 = l1[:, 0 * C:1 * C]
    s2 = l1[:, 1 * C:2 * C]
    sup_sim1 = l1[:, 2 * C:3 * C]
    sup_stf1 = l1[:, 3 * C:4 * C]
    sup_stb1 = l1[:, 4 * C:5 * C]

    # ---- similarity adjacency: softmax(s1 @ s2^T) without materializing s2^T
    logits = lax.dot_general(s1, s2, (((1,), (1,)), ((), ())),
                             preferred_element_type=jnp.float32)       # (Nr, Nr)
    m = jnp.max(logits, axis=-1, keepdims=True)
    e = jnp.exp(logits - m)
    adj = e / jnp.sum(e, axis=-1, keepdims=True)

    # ---- GCN layer 1
    h_sim = relu(jnp.dot(adj, sup_sim1, preferred_element_type=jnp.float32))
    h_st = (relu(jnp.dot(fg, sup_stf1, preferred_element_type=jnp.float32))
            + relu(jnp.dot(bg, sup_stb1, preferred_element_type=jnp.float32)))

    # ---- GCN layer 2
    sup = jnp.dot(h_sim, wsim2_ref[...], preferred_element_type=jnp.float32)
    h_sim = relu(jnp.dot(adj, sup, preferred_element_type=jnp.float32))
    sup = jnp.dot(h_st, wst2_ref[...], preferred_element_type=jnp.float32)   # (Nr, 2C)
    h_st = (relu(jnp.dot(fg, sup[:, :C], preferred_element_type=jnp.float32))
            + relu(jnp.dot(bg, sup[:, C:], preferred_element_type=jnp.float32)))

    # ---- GCN layer 3
    sup = jnp.dot(h_sim, wsim3_ref[...], preferred_element_type=jnp.float32)
    sim_out = relu(jnp.dot(adj, sup, preferred_element_type=jnp.float32))
    sup = jnp.dot(h_st, wst3_ref[...], preferred_element_type=jnp.float32)   # (Nr, 2*Cout)
    st_out = (relu(jnp.dot(fg, sup[:, :Cout], preferred_element_type=jnp.float32))
              + relu(jnp.dot(bg, sup[:, Cout:], preferred_element_type=jnp.float32)))

    # ---- (sim + st).mean over rois, folded into the kernel. Dropout = identity.
    o_ref[0] = jnp.mean(sim_out + st_out, axis=0, keepdims=True)     # (1, Cout)


# --------------------------------------------------------------------------
# Wrapper
# --------------------------------------------------------------------------

def rgcn_forward(params, rois_features, front_graph, back_graph):
    B, T, N, C = rois_features.shape
    Nr = T * N
    x = rois_features.reshape(B, Nr, C)
    Cout = params["sim_gc3_w"].shape[1]

    # Concatenate weights once (lane-widening of the MXU matmuls).
    w_l1 = jnp.concatenate(
        [params["sim_embed1_wT"], params["sim_embed2_wT"],
         params["sim_gc1_w"], params["st_gc1_w"], params["st_gc1_back_w"]],
        axis=1)                                                       # (C, 5C)
    w_sim2 = params["sim_gc2_w"]                                      # (C, C)
    w_st2 = jnp.concatenate([params["st_gc2_w"], params["st_gc2_back_w"]], 1)   # (C, 2C)
    w_sim3 = params["sim_gc3_w"]                                      # (C, Cout)
    w_st3 = jnp.concatenate([params["st_gc3_w"], params["st_gc3_back_w"]], 1)   # (C, 2*Cout)

    out = pl.pallas_call(
        _rgcn_fused_kernel,
        out_shape=jax.ShapeDtypeStruct((B, 1, Cout), jnp.float32),
        grid=(B,),
        in_specs=[
            pl.BlockSpec((1, Nr, C), lambda b: (b, 0, 0)),            # x
            pl.BlockSpec((1, Nr, Nr), lambda b: (b, 0, 0)),           # front graph
            pl.BlockSpec((1, Nr, Nr), lambda b: (b, 0, 0)),           # back graph
            pl.BlockSpec((C, 5 * C), lambda b: (0, 0)),               # layer-1 cat
            pl.BlockSpec((C, C), lambda b: (0, 0)),                   # sim_gc2
            pl.BlockSpec((C, 2 * C), lambda b: (0, 0)),               # st_gc2 cat
            pl.BlockSpec((C, Cout), lambda b: (0, 0)),                # sim_gc3
            pl.BlockSpec((C, 2 * Cout), lambda b: (0, 0)),            # st_gc3 cat
        ],
        out_specs=pl.BlockSpec((1, 1, Cout), lambda b: (b, 0, 0)),
        compiler_params=pltpu.CompilerParams(
            dimension_semantics=("parallel",)),
    )(x, front_graph, back_graph, w_l1, w_sim2, w_st2, w_sim3, w_st3)

    return out.reshape(B, Cout)


# --------------------------------------------------------------------------
# Plain-JAX reference (correctness check)
# --------------------------------------------------------------------------

def rgcn_reference(params, rois_features, front_graph, back_graph):
    B, T, N, C = rois_features.shape
    x = rois_features.reshape(B, T * N, C)
    s1 = x @ params["sim_embed1_wT"]
    s2 = x @ params["sim_embed2_wT"]
    adj = jax.nn.softmax(jnp.einsum("bic,bjc->bij", s1, s2), axis=-1)

    def gc(a, h, w):
        return jax.nn.relu(jnp.einsum("bij,bjc->bic", a, h @ w))

    h = gc(adj, x, params["sim_gc1_w"])
    h = gc(adj, h, params["sim_gc2_w"])
    sim_out = gc(adj, h, params["sim_gc3_w"])

    h = gc(front_graph, x, params["st_gc1_w"]) + gc(back_graph, x, params["st_gc1_back_w"])
    h = gc(front_graph, h, params["st_gc2_w"]) + gc(back_graph, h, params["st_gc2_back_w"])
    st_out = gc(front_graph, h, params["st_gc3_w"]) + gc(back_graph, h, params["st_gc3_back_w"])
    return (sim_out + st_out).mean(axis=1)


# --------------------------------------------------------------------------
# Main
# --------------------------------------------------------------------------

if __name__ == "__main__":
    B, T, N, C = 2, 2, 4, 32          # batch, frames, rois/frame, in_channel
    out_channel = 32
    Nr = T * N

    key = jax.random.PRNGKey(0)
    ks = jax.random.split(key, 16)

    rois_features = jax.random.normal(ks[0], (B, T, N, C), jnp.float32)

    # Parameters (mirrors RGCN.init_weight: GCN weights ~ N(0, 0.001),
    # st_gc3_back = 0; sim_embed Linears get a small deterministic normal init).
    # Linear weights are stored pre-transposed as (in, out) so the kernel does x @ W^T.
    params = {
        "sim_embed1_wT": 0.02 * jax.random.normal(ks[2], (C, C), jnp.float32),
        "sim_embed2_wT": 0.02 * jax.random.normal(ks[3], (C, C), jnp.float32),
        "sim_gc1_w": 0.001 * jax.random.normal(ks[4], (C, C), jnp.float32),
        "sim_gc2_w": 0.001 * jax.random.normal(ks[5], (C, C), jnp.float32),
        "sim_gc3_w": 0.001 * jax.random.normal(ks[6], (C, out_channel), jnp.float32),
        "st_gc1_w": 0.001 * jax.random.normal(ks[7], (C, C), jnp.float32),
        "st_gc2_w": 0.001 * jax.random.normal(ks[8], (C, C), jnp.float32),
        "st_gc3_w": 0.001 * jax.random.normal(ks[9], (C, out_channel), jnp.float32),
        "st_gc1_back_w": 0.001 * jax.random.normal(ks[10], (C, C), jnp.float32),
        "st_gc2_back_w": 0.001 * jax.random.normal(ks[11], (C, C), jnp.float32),
        "st_gc3_back_w": jnp.zeros((C, out_channel), jnp.float32),
    }

    # TODO(synk): get_st_graph(rois) is not defined in the reference source; build
    # deterministic temporal forward/backward adjacency graphs (row-normalized,
    # self-loops) instead of the IoU/temporal-linking graph it would produce.
    eye = jnp.eye(Nr, dtype=jnp.float32)
    tidx = jnp.arange(Nr) // N
    fwd = (tidx[None, :] == tidx[:, None] + 1).astype(jnp.float32) + eye
    bwd = (tidx[None, :] == tidx[:, None] - 1).astype(jnp.float32) + eye
    front_graph = jnp.broadcast_to(fwd / fwd.sum(-1, keepdims=True), (B, Nr, Nr))
    back_graph = jnp.broadcast_to(bwd / bwd.sum(-1, keepdims=True), (B, Nr, Nr))

    out = jax.block_until_ready(
        rgcn_forward(params, rois_features, front_graph, back_graph))
    assert out.shape == (B, out_channel), out.shape

    ref = jax.block_until_ready(
        rgcn_reference(params, rois_features, front_graph, back_graph))
    assert jnp.allclose(out, ref, atol=1e-5, rtol=1e-5), \
        float(jnp.max(jnp.abs(out - ref)))

    print("KERNEL_OK")
</pallas_src>

<mosaic_0001>
module attributes {stable_mosaic.version = 11 : i64} {
  func.func @_rgcn_fused_kernel(%arg0: i32, %arg1: memref<1x8x32xf32, #tpu.memory_space<vmem>>, %arg2: memref<1x8x8xf32, #tpu.memory_space<vmem>>, %arg3: memref<1x8x8xf32, #tpu.memory_space<vmem>>, %arg4: memref<32x160xf32, #tpu.memory_space<vmem>>, %arg5: memref<32x32xf32, #tpu.memory_space<vmem>>, %arg6: memref<32x64xf32, #tpu.memory_space<vmem>>, %arg7: memref<32x32xf32, #tpu.memory_space<vmem>>, %arg8: memref<32x64xf32, #tpu.memory_space<vmem>>, %arg9: memref<1x1x32xf32, #tpu.memory_space<vmem>>) attributes {dimension_semantics = [#tpu.dimension_semantics<parallel>], iteration_bounds = array<i64: 2>, scalar_prefetch = 0 : i64, scratch_operands = 0 : i64, tpu.core_type = #tpu.core_type<tc>, window_params = [{transform_indices = @transform_0, window_bounds = array<i64: 1, 8, 32>}, {transform_indices = @transform_1, window_bounds = array<i64: 1, 8, 8>}, {transform_indices = @transform_2, window_bounds = array<i64: 1, 8, 8>}, {pipeline_mode = #tpu.pipeline_mode<synchronous>, transform_indices = @transform_3, window_bounds = array<i64: 32, 160>}, {pipeline_mode = #tpu.pipeline_mode<synchronous>, transform_indices = @transform_4, window_bounds = array<i64: 32, 32>}, {pipeline_mode = #tpu.pipeline_mode<synchronous>, transform_indices = @transform_5, window_bounds = array<i64: 32, 64>}, {pipeline_mode = #tpu.pipeline_mode<synchronous>, transform_indices = @transform_6, window_bounds = array<i64: 32, 32>}, {pipeline_mode = #tpu.pipeline_mode<synchronous>, transform_indices = @transform_7, window_bounds = array<i64: 32, 64>}, {transform_indices = @transform_8, window_bounds = array<i64: 1, 1, 32>}]} {
    %c0 = arith.constant 0 : index
    %c0_0 = arith.constant 0 : index
    %c0_1 = arith.constant 0 : index
    %0 = vector.load %arg1[%c0, %c0_0, %c0_1] : memref<1x8x32xf32, #tpu.memory_space<vmem>>, vector<1x8x32xf32>
    %1 = vector.shape_cast %0 : vector<1x8x32xf32> to vector<8x32xf32>
    %c0_2 = arith.constant 0 : index
    %c0_3 = arith.constant 0 : index
    %c0_4 = arith.constant 0 : index
    %2 = vector.load %arg2[%c0_2, %c0_3, %c0_4] : memref<1x8x8xf32, #tpu.memory_space<vmem>>, vector<1x8x8xf32>
    %3 = vector.shape_cast %2 : vector<1x8x8xf32> to vector<8x8xf32>
    %c0_5 = arith.constant 0 : index
    %c0_6 = arith.constant 0 : index
    %c0_7 = arith.constant 0 : index
    %4 = vector.load %arg3[%c0_5, %c0_6, %c0_7] : memref<1x8x8xf32, #tpu.memory_space<vmem>>, vector<1x8x8xf32>
    %5 = vector.shape_cast %4 : vector<1x8x8xf32> to vector<8x8xf32>
    %c0_8 = arith.constant 0 : index
    %c0_9 = arith.constant 0 : index
    %6 = vector.load %arg4[%c0_8, %c0_9] : memref<32x160xf32, #tpu.memory_space<vmem>>, vector<32x160xf32>
    %cst = arith.constant dense<0.000000e+00> : vector<8x160xf32>
    %7 = tpu.matmul %1, %6, %cst {dimension_numbers = #tpu.dot_dimension_numbers<[1], [0], [0], [1], [0, 0, 1, 1], [], []>} : vector<8x32xf32>, vector<32x160xf32>, vector<8x160xf32> -> vector<8x160xf32>
    %8 = vector.extract_strided_slice %7 {offsets = [0, 0], sizes = [8, 32], strides = [1, 1]} : vector<8x160xf32> to vector<8x32xf32>
    %9 = vector.extract_strided_slice %7 {offsets = [0, 32], sizes = [8, 32], strides = [1, 1]} : vector<8x160xf32> to vector<8x32xf32>
    %10 = vector.extract_strided_slice %7 {offsets = [0, 64], sizes = [8, 32], strides = [1, 1]} : vector<8x160xf32> to vector<8x32xf32>
    %11 = vector.extract_strided_slice %7 {offsets = [0, 96], sizes = [8, 32], strides = [1, 1]} : vector<8x160xf32> to vector<8x32xf32>
    %12 = vector.extract_strided_slice %7 {offsets = [0, 128], sizes = [8, 32], strides = [1, 1]} : vector<8x160xf32> to vector<8x32xf32>
    %cst_10 = arith.constant dense<0.000000e+00> : vector<8x8xf32>
    %13 = tpu.matmul %8, %9, %cst_10 {dimension_numbers = #tpu.dot_dimension_numbers<[1], [1], [0], [0], [0, 0, 1, 0], [], []>} : vector<8x32xf32>, vector<8x32xf32>, vector<8x8xf32> -> vector<8x8xf32>
    %cst_11 = arith.constant dense<0xFF800000> : vector<8xf32>
    %14 = vector.multi_reduction <maximumf>, %13, %cst_11 [1] : vector<8x8xf32> to vector<8xf32>
    %15 = vector.shape_cast %14 : vector<8xf32> to vector<8x1xf32>
    %16 = vector.broadcast %15 : vector<8x1xf32> to vector<8x8xf32>
    %17 = arith.subf %13, %16 : vector<8x8xf32>
    %18 = math.exp %17 : vector<8x8xf32>
    %cst_12 = arith.constant dense<0.000000e+00> : vector<8xf32>
    %19 = vector.multi_reduction <add>, %18, %cst_12 [1] : vector<8x8xf32> to vector<8xf32>
    %20 = vector.shape_cast %19 : vector<8xf32> to vector<8x1xf32>
    %21 = vector.broadcast %20 : vector<8x1xf32> to vector<8x8xf32>
    %22 = arith.divf %18, %21 : vector<8x8xf32>
    %cst_13 = arith.constant dense<0.000000e+00> : vector<8x32xf32>
    %23 = tpu.matmul %22, %10, %cst_13 {dimension_numbers = #tpu.dot_dimension_numbers<[1], [0], [0], [1], [0, 0, 1, 1], [], []>} : vector<8x8xf32>, vector<8x32xf32>, vector<8x32xf32> -> vector<8x32xf32>
    %cst_14 = arith.constant 0.000000e+00 : f32
    %24 = vector.broadcast %cst_14 : f32 to vector<8x32xf32>
    %25 = arith.maximumf %23, %24 : vector<8x32xf32>
    %cst_15 = arith.constant dense<0.000000e+00> : vector<8x32xf32>
    %26 = tpu.matmul %3, %11, %cst_15 {dimension_numbers = #tpu.dot_dimension_numbers<[1], [0], [0], [1], [0, 0, 1, 1], [], []>} : vector<8x8xf32>, vector<8x32xf32>, vector<8x32xf32> -> vector<8x32xf32>
    %cst_16 = arith.constant 0.000000e+00 : f32
    %27 = vector.broadcast %cst_16 : f32 to vector<8x32xf32>
    %28 = arith.maximumf %26, %27 : vector<8x32xf32>
    %cst_17 = arith.constant dense<0.000000e+00> : vector<8x32xf32>
    %29 = tpu.matmul %5, %12, %cst_17 {dimension_numbers = #tpu.dot_dimension_numbers<[1], [0], [0], [1], [0, 0, 1, 1], [], []>} : vector<8x8xf32>, vector<8x32xf32>, vector<8x32xf32> -> vector<8x32xf32>
    %cst_18 = arith.constant 0.000000e+00 : f32
    %30 = vector.broadcast %cst_18 : f32 to vector<8x32xf32>
    %31 = arith.maximumf %29, %30 : vector<8x32xf32>
    %32 = arith.addf %28, %31 : vector<8x32xf32>
    %c0_19 = arith.constant 0 : index
    %c0_20 = arith.constant 0 : index
    %33 = vector.load %arg5[%c0_19, %c0_20] : memref<32x32xf32, #tpu.memory_space<vmem>>, vector<32x32xf32>
    %cst_21 = arith.constant dense<0.000000e+00> : vector<8x32xf32>
    %34 = tpu.matmul %25, %33, %cst_21 {dimension_numbers = #tpu.dot_dimension_numbers<[1], [0], [0], [1], [0, 0, 1, 1], [], []>} : vector<8x32xf32>, vector<32x32xf32>, vector<8x32xf32> -> vector<8x32xf32>
    %cst_22 = arith.constant dense<0.000000e+00> : vector<8x32xf32>
    %35 = tpu.matmul %22, %34, %cst_22 {dimension_numbers = #tpu.dot_dimension_numbers<[1], [0], [0], [1], [0, 0, 1, 1], [], []>} : vector<8x8xf32>, vector<8x32xf32>, vector<8x32xf32> -> vector<8x32xf32>
    %cst_23 = arith.constant 0.000000e+00 : f32
    %36 = vector.broadcast %cst_23 : f32 to vector<8x32xf32>
    %37 = arith.maximumf %35, %36 : vector<8x32xf32>
    %c0_24 = arith.constant 0 : index
    %c0_25 = arith.constant 0 : index
    %38 = vector.load %arg6[%c0_24, %c0_25] : memref<32x64xf32, #tpu.memory_space<vmem>>, vector<32x64xf32>
    %cst_26 = arith.constant dense<0.000000e+00> : vector<8x64xf32>
    %39 = tpu.matmul %32, %38, %cst_26 {dimension_numbers = #tpu.dot_dimension_numbers<[1], [0], [0], [1], [0, 0, 1, 1], [], []>} : vector<8x32xf32>, vector<32x64xf32>, vector<8x64xf32> -> vector<8x64xf32>
    %40 = vector.extract_strided_slice %39 {offsets = [0, 0], sizes = [8, 32], strides = [1, 1]} : vector<8x64xf32> to vector<8x32xf32>
    %cst_27 = arith.constant dense<0.000000e+00> : vector<8x32xf32>
    %41 = tpu.matmul %3, %40, %cst_27 {dimension_numbers = #tpu.dot_dimension_numbers<[1], [0], [0], [1], [0, 0, 1, 1], [], []>} : vector<8x8xf32>, vector<8x32xf32>, vector<8x32xf32> -> vector<8x32xf32>
    %cst_28 = arith.constant 0.000000e+00 : f32
    %42 = vector.broadcast %cst_28 : f32 to vector<8x32xf32>
    %43 = arith.maximumf %41, %42 : vector<8x32xf32>
    %44 = vector.extract_strided_slice %39 {offsets = [0, 32], sizes = [8, 32], strides = [1, 1]} : vector<8x64xf32> to vector<8x32xf32>
    %cst_29 = arith.constant dense<0.000000e+00> : vector<8x32xf32>
    %45 = tpu.matmul %5, %44, %cst_29 {dimension_numbers = #tpu.dot_dimension_numbers<[1], [0], [0], [1], [0, 0, 1, 1], [], []>} : vector<8x8xf32>, vector<8x32xf32>, vector<8x32xf32> -> vector<8x32xf32>
    %cst_30 = arith.constant 0.000000e+00 : f32
    %46 = vector.broadcast %cst_30 : f32 to vector<8x32xf32>
    %47 = arith.maximumf %45, %46 : vector<8x32xf32>
    %48 = arith.addf %43, %47 : vector<8x32xf32>
    %c0_31 = arith.constant 0 : index
    %c0_32 = arith.constant 0 : index
    %49 = vector.load %arg7[%c0_31, %c0_32] : memref<32x32xf32, #tpu.memory_space<vmem>>, vector<32x32xf32>
    %cst_33 = arith.constant dense<0.000000e+00> : vector<8x32xf32>
    %50 = tpu.matmul %37, %49, %cst_33 {dimension_numbers = #tpu.dot_dimension_numbers<[1], [0], [0], [1], [0, 0, 1, 1], [], []>} : vector<8x32xf32>, vector<32x32xf32>, vector<8x32xf32> -> vector<8x32xf32>
    %cst_34 = arith.constant dense<0.000000e+00> : vector<8x32xf32>
    %51 = tpu.matmul %22, %50, %cst_34 {dimension_numbers = #tpu.dot_dimension_numbers<[1], [0], [0], [1], [0, 0, 1, 1], [], []>} : vector<8x8xf32>, vector<8x32xf32>, vector<8x32xf32> -> vector<8x32xf32>
    %cst_35 = arith.constant 0.000000e+00 : f32
    %52 = vector.broadcast %cst_35 : f32 to vector<8x32xf32>
    %53 = arith.maximumf %51, %52 : vector<8x32xf32>
    %c0_36 = arith.constant 0 : index
    %c0_37 = arith.constant 0 : index
    %54 = vector.load %arg8[%c0_36, %c0_37] : memref<32x64xf32, #tpu.memory_space<vmem>>, vector<32x64xf32>
    %cst_38 = arith.constant dense<0.000000e+00> : vector<8x64xf32>
    %55 = tpu.matmul %48, %54, %cst_38 {dimension_numbers = #tpu.dot_dimension_numbers<[1], [0], [0], [1], [0, 0, 1, 1], [], []>} : vector<8x32xf32>, vector<32x64xf32>, vector<8x64xf32> -> vector<8x64xf32>
    %56 = vector.extract_strided_slice %55 {offsets = [0, 0], sizes = [8, 32], strides = [1, 1]} : vector<8x64xf32> to vector<8x32xf32>
    %cst_39 = arith.constant dense<0.000000e+00> : vector<8x32xf32>
    %57 = tpu.matmul %3, %56, %cst_39 {dimension_numbers = #tpu.dot_dimension_numbers<[1], [0], [0], [1], [0, 0, 1, 1], [], []>} : vector<8x8xf32>, vector<8x32xf32>, vector<8x32xf32> -> vector<8x32xf32>
    %cst_40 = arith.constant 0.000000e+00 : f32
    %58 = vector.broadcast %cst_40 : f32 to vector<8x32xf32>
    %59 = arith.maximumf %57, %58 : vector<8x32xf32>
    %60 = vector.extract_strided_slice %55 {offsets = [0, 32], sizes = [8, 32], strides = [1, 1]} : vector<8x64xf32> to vector<8x32xf32>
    %cst_41 = arith.constant dense<0.000000e+00> : vector<8x32xf32>
    %61 = tpu.matmul %5, %60, %cst_41 {dimension_numbers = #tpu.dot_dimension_numbers<[1], [0], [0], [1], [0, 0, 1, 1], [], []>} : vector<8x8xf32>, vector<8x32xf32>, vector<8x32xf32> -> vector<8x32xf32>
    %cst_42 = arith.constant 0.000000e+00 : f32
    %62 = vector.broadcast %cst_42 : f32 to vector<8x32xf32>
    %63 = arith.maximumf %61, %62 : vector<8x32xf32>
    %64 = arith.addf %59, %63 : vector<8x32xf32>
    %65 = arith.addf %53, %64 : vector<8x32xf32>
    %cst_43 = arith.constant dense<0.000000e+00> : vector<32xf32>
    %66 = vector.multi_reduction <add>, %65, %cst_43 [0] : vector<8x32xf32> to vector<32xf32>
    %67 = vector.shape_cast %66 : vector<32xf32> to vector<1x32xf32>
    %cst_44 = arith.constant 8.000000e+00 : f32
    %68 = vector.broadcast %cst_44 : f32 to vector<1x32xf32>
    %69 = arith.divf %67, %68 : vector<1x32xf32>
    %c0_45 = arith.constant 0 : index
    %c0_46 = arith.constant 0 : index
    %c0_47 = arith.constant 0 : index
    %70 = vector.load %arg9[%c0_45, %c0_46, %c0_47] : memref<1x1x32xf32, #tpu.memory_space<vmem>>, vector<1x1x32xf32>
    %71 = vector.shape_cast %70 : vector<1x1x32xf32> to vector<1x32xf32>
    %72 = vector.shape_cast %69 : vector<1x32xf32> to vector<1x1x32xf32>
    tpu.vector_store %arg9[%c0_45, %c0_46, %c0_47], %72 {strides = array<i32>} : memref<1x1x32xf32, #tpu.memory_space<vmem>>, vector<1x1x32xf32>,
    return
  }
  func.func @transform_0(%arg0: i32) -> (i32, i32, i32) {
    %c0_i32 = arith.constant 0 : i32
    %c0_i32_0 = arith.constant 0 : i32
    %c0_i32_1 = arith.constant 0 : i32
    return %arg0, %c0_i32, %c0_i32_0 : i32, i32, i32
  }
  func.func @transform_1(%arg0: i32) -> (i32, i32, i32) {
    %c0_i32 = arith.constant 0 : i32
    %c0_i32_0 = arith.constant 0 : i32
    %c0_i32_1 = arith.constant 0 : i32
    return %arg0, %c0_i32, %c0_i32_0 : i32, i32, i32
  }
  func.func @transform_2(%arg0: i32) -> (i32, i32, i32) {
    %c0_i32 = arith.constant 0 : i32
    %c0_i32_0 = arith.constant 0 : i32
    %c0_i32_1 = arith.constant 0 : i32
    return %arg0, %c0_i32, %c0_i32_0 : i32, i32, i32
  }
  func.func @transform_3(%arg0: i32) -> (i32, i32) {
    %c0_i32 = arith.constant 0 : i32
    %c0_i32_0 = arith.constant 0 : i32
    %c0_i32_1 = arith.constant 0 : i32
    return %c0_i32, %c0_i32_0 : i32, i32
  }
  func.func @transform_4(%arg0: i32) -> (i32, i32) {
    %c0_i32 = arith.constant 0 : i32
    %c0_i32_0 = arith.constant 0 : i32
    %c0_i32_1 = arith.constant 0 : i32
    return %c0_i32, %c0_i32_0 : i32, i32
  }
  func.func @transform_5(%arg0: i32) -> (i32, i32) {
    %c0_i32 = arith.constant 0 : i32
    %c0_i32_0 = arith.constant 0 : i32
    %c0_i32_1 = arith.constant 0 : i32
    return %c0_i32, %c0_i32_0 : i32, i32
  }
  func.func @transform_6(%arg0: i32) -> (i32, i32) {
    %c0_i32 = arith.constant 0 : i32
    %c0_i32_0 = arith.constant 0 : i32
    %c0_i32_1 = arith.constant 0 : i32
    return %c0_i32, %c0_i32_0 : i32, i32
  }
  func.func @transform_7(%arg0: i32) -> (i32, i32) {
    %c0_i32 = arith.constant 0 : i32
    %c0_i32_0 = arith.constant 0 : i32
    %c0_i32_1 = arith.constant 0 : i32
    return %c0_i32, %c0_i32_0 : i32, i32
  }
  func.func @transform_8(%arg0: i32) -> (i32, i32, i32) {
    %c0_i32 = arith.constant 0 : i32
    %c0_i32_0 = arith.constant 0 : i32
    %c0_i32_1 = arith.constant 0 : i32
    return %arg0, %c0_i32, %c0_i32_0 : i32, i32, i32
  }
}

</mosaic_0001>

<llo_original>
// kernel: tpu_custom_call.1
$region0: #{tpu_custom_call.1}
  #allocation0 [shape = 'u32[]', space=smem, size = 0x4, offset = 0x4, fixed_abs, tag = 'smem constant byte address 0x4 - core index']
  #allocation1 [shape = 'u32[144,128]{1,0:T(1,128)}', space=vmem, size = 0x12000, scoped, tag = 'internal scratch']
  %s0 = inlined_call_operand.hbm [shape: f32[2,8,32], index: 0, kind: input, shape index: {}]
  %s1 = inlined_call_operand.hbm [shape: f32[2,8,8], index: 1, kind: input, shape index: {}]
  %s2 = inlined_call_operand.hbm [shape: f32[2,8,8], index: 2, kind: input, shape index: {}]
  %s3 = inlined_call_operand.hbm [shape: f32[32,160], index: 3, kind: input, shape index: {}]
  %s4 = inlined_call_operand.hbm [shape: f32[32,32], index: 4, kind: input, shape index: {}]
  %s5 = inlined_call_operand.hbm [shape: f32[32,64], index: 5, kind: input, shape index: {}]
  %s6 = inlined_call_operand.hbm [shape: f32[32,32], index: 6, kind: input, shape index: {}]
  %s7 = inlined_call_operand.hbm [shape: f32[32,64], index: 7, kind: input, shape index: {}]
  %s8 = inlined_call_operand.hbm [shape: f32[2,1,32], index: 8, kind: output, shape index: {}]
  %s9 = sld [smem:[#allocation0]]
  $region97: #{tpu_custom_call.1} parent=0
    _
  %s11 = ssub.s32 1, %s9
  %s12 = scalar_select 0, %s11, %s9
  $region1: #{tpu_custom_call.1} parent=0
    #allocation2 [shape = 'u8[8192]{0}', space=vmem, size = 0x2000, scoped, tag = 'input window, operand 0']
    #allocation3 [shape = 's32[2]{0}', space=sflag, size = 0x8, scoped, tag = 'scoped memory for tpu_custom_call.1']
    #allocation4 [shape = 's32[2]{0}', space=sflag, size = 0x8, scoped, tag = 'scoped memory for tpu_custom_call.1']
    #allocation5 [shape = 'u8[8192]{0}', space=vmem, size = 0x2000, scoped, tag = 'input window, operand 1']
    #allocation6 [shape = 's32[2]{0}', space=sflag, size = 0x8, scoped, tag = 'scoped memory for tpu_custom_call.1']
    #allocation7 [shape = 'u8[8192]{0}', space=vmem, size = 0x2000, scoped, tag = 'input window, operand 2']
    #allocation8 [shape = 'u8[32768]{0}', space=vmem, size = 0x8000, scoped, tag = 'input window, operand 3, single buffered']
    #allocation9 [shape = 's32[1]{0}', space=sflag, size = 0x4, scoped, tag = 'scoped memory for tpu_custom_call.1']
    #allocation10 [shape = 'u8[16384]{0}', space=vmem, size = 0x4000, scoped, tag = 'input window, operand 4, single buffered']
    #allocation11 [shape = 'u8[16384]{0}', space=vmem, size = 0x4000, scoped, tag = 'input window, operand 5, single buffered']
    #allocation12 [shape = 's32[1]{0}', space=sflag, size = 0x4, scoped, tag = 'scoped memory for tpu_custom_call.1']
    #allocation13 [shape = 'u8[16384]{0}', space=vmem, size = 0x4000, scoped, tag = 'input window, operand 6, single buffered']
    #allocation14 [shape = 'u8[16384]{0}', space=vmem, size = 0x4000, scoped, tag = 'input window, operand 7, single buffered']
    #allocation15 [shape = 's32[1]{0}', space=sflag, size = 0x4, scoped, tag = 'scoped memory for tpu_custom_call.1']
    #allocation16 [shape = 'u8[1024]{0}', space=vmem, size = 0x400, scoped, tag = 'output window, operand 0']
    %13 = vsyncpa [#allocation3], 0
    %s14 = scalar_lea.sflag [#allocation3], 1
    %15 = vsyncpa %s14, 0
    %16 = vsyncpa [#allocation6], 0
    %s17 = scalar_lea.sflag [#allocation6], 1
    %18 = vsyncpa %s17, 0
    %19 = vsyncpa [#allocation9], 0
    %20 = vsyncpa [#allocation12], 0
    %21 = vsyncpa [#allocation15], 0
    %22 = vsyncpa [#allocation4], 0
    %s23 = scalar_lea.sflag [#allocation4], 1
    %24 = vsyncpa %s23, 0
    loop: start=0, step=1, limit=4
    $region2: #{tpu_custom_call.1} parent=1 // loop_pre_header
      _
    $region3: #{tpu_custom_call.1} parent=1 // loop_header
      %s26 = sphi 0, %s30
      %p27 = scmp.ge.s32.totalorder %s26, 4
      %s36 = sphi 0, %s38
      %s39 = sphi 0, %s36
      %s40 = sphi 0, %s39
      %s56 = sphi 0, %s40
      %s62 = sphi 0, %s64
      %s65 = sphi 0, %s62
      %s66 = sphi 0, %s65
      %s82 = sphi 0, %s66
      %s88 = sphi 0, %s90
      %s91 = sphi 0, %s88
      %s92 = sphi 0, %s91
      %s108 = sphi 0, %s92
      %s112 = sphi 0, %s112
      %s114 = sphi 0, %s112
      %s115 = sphi 0, %s114
      %s129 = sphi 0, %s115
      %s133 = sphi 0, %s133
      %s135 = sphi 0, %s133
      %s136 = sphi 0, %s135
      %s150 = sphi 0, %s136
      %s154 = sphi 0, %s154
      %s156 = sphi 0, %s154
      %s157 = sphi 0, %s156
      %s171 = sphi 0, %s157
      %s175 = sphi 0, %s175
      %s177 = sphi 0, %s175
      %s178 = sphi 0, %s177
      %s192 = sphi 0, %s178
      %s196 = sphi 0, %s196
      %s198 = sphi 0, %s196
      %s199 = sphi 0, %s198
      %s213 = sphi 0, %s199
      %s219 = sphi 0, %s221
      %s222 = sphi 0, %s219
      %s223 = sphi 0, %s222
      %s239 = sphi 0, %s223
    $region4: #{tpu_custom_call.1} parent=1 // loop_header_branch
      %29 = sbr.rel (%p27) target = $region8
    $region5: #{tpu_custom_call.1} parent=1 // loop_body
      %s31 = ssub.s32 %s26, 1
      %s32 = ssub.s32 %s26, 2
      %s33 = sadd.s32 %s26, 1
      %s34 = ssub.s32 %s26, %s33
      %p35 = scmp.eq.s32.totalorder %s34, 0
      %s37 = sadd.s32 %s36, 1
      %s38 = scalar_select %p35, %s36, %s37
      %p41 = pneg %p35
      %p42 = scmp.eq.s32.totalorder %s26, 1
      %p43 = por %p41, %p42
      %p44 = scmp.ne.s32.totalorder %s36, %s39
      %p45 = scmp.eq.s32.totalorder %s26, 0
      %p46 = por %p44, %p45
      %p47 = scmp.ne.s32.totalorder %s36, %s39
      %p48 = scmp.eq.s32.totalorder %s31, 1
      %p49 = por %p47, %p48
      %p50 = scmp.ne.s32.totalorder %s39, %s40
      %p51 = scmp.eq.s32.totalorder %s31, 0
      %p52 = por %p50, %p51
      %p53 = scmp.ne.s32.totalorder %s39, %s40
      %p54 = scmp.eq.s32.totalorder %s32, 1
      %p55 = por %p53, %p54
      %p57 = scmp.ne.s32.totalorder %s40, %s56
      %p58 = scmp.eq.s32.totalorder %s32, 0
      %p59 = por %p57, %p58
      %s60 = ssub.s32 %s26, %s33
      %p61 = scmp.eq.s32.totalorder %s60, 0
      %s63 = sadd.s32 %s62, 1
      %s64 = scalar_select %p61, %s62, %s63
      %p67 = pneg %p61
      %p68 = scmp.eq.s32.totalorder %s26, 1
      %p69 = por %p67, %p68
      %p70 = scmp.ne.s32.totalorder %s62, %s65
      %p71 = scmp.eq.s32.totalorder %s26, 0
      %p72 = por %p70, %p71
      %p73 = scmp.ne.s32.totalorder %s62, %s65
      %p74 = scmp.eq.s32.totalorder %s31, 1
      %p75 = por %p73, %p74
      %p76 = scmp.ne.s32.totalorder %s65, %s66
      %p77 = scmp.eq.s32.totalorder %s31, 0
      %p78 = por %p76, %p77
      %p79 = scmp.ne.s32.totalorder %s65, %s66
      %p80 = scmp.eq.s32.totalorder %s32, 1
      %p81 = por %p79, %p80
      %p83 = scmp.ne.s32.totalorder %s66, %s82
      %p84 = scmp.eq.s32.totalorder %s32, 0
      %p85 = por %p83, %p84
      %s86 = ssub.s32 %s26, %s33
      %p87 = scmp.eq.s32.totalorder %s86, 0
      %s89 = sadd.s32 %s88, 1
      %s90 = scalar_select %p87, %s88, %s89
      %p93 = pneg %p87
      %p94 = scmp.eq.s32.totalorder %s26, 1
      %p95 = por %p93, %p94
      %p96 = scmp.ne.s32.totalorder %s88, %s91
      %p97 = scmp.eq.s32.totalorder %s26, 0
      %p98 = por %p96, %p97
      %p99 = scmp.ne.s32.totalorder %s88, %s91
      %p100 = scmp.eq.s32.totalorder %s31, 1
      %p101 = por %p99, %p100
      %p102 = scmp.ne.s32.totalorder %s91, %s92
      %p103 = scmp.eq.s32.totalorder %s31, 0
      %p104 = por %p102, %p103
      %p105 = scmp.ne.s32.totalorder %s91, %s92
      %p106 = scmp.eq.s32.totalorder %s32, 1
      %p107 = por %p105, %p106
      %p109 = scmp.ne.s32.totalorder %s92, %s108
      %p110 = scmp.eq.s32.totalorder %s32, 0
      %p111 = por %p109, %p110
      %s113 = sadd.s32 %s112, 1
      %p116 = scmp.eq.s32.totalorder %s26, 1
      %p117 = scmp.ne.s32.totalorder %s112, %s114
      %p118 = scmp.eq.s32.totalorder %s26, 0
      %p119 = por %p117, %p118
      %p120 = scmp.ne.s32.totalorder %s112, %s114
      %p121 = scmp.eq.s32.totalorder %s31, 1
      %p122 = por %p120, %p121
      %p123 = scmp.ne.s32.totalorder %s114, %s115
      %p124 = scmp.eq.s32.totalorder %s31, 0
      %p125 = por %p123, %p124
      %p126 = scmp.ne.s32.totalorder %s114, %s115
      %p127 = scmp.eq.s32.totalorder %s32, 1
      %p128 = por %p126, %p127
      %p130 = scmp.ne.s32.totalorder %s115, %s129
      %p131 = scmp.eq.s32.totalorder %s32, 0
      %p132 = por %p130, %p131
      %s134 = sadd.s32 %s133, 1
      %p137 = scmp.eq.s32.totalorder %s26, 1
      %p138 = scmp.ne.s32.totalorder %s133, %s135
      %p139 = scmp.eq.s32.totalorder %s26, 0
      %p140 = por %p138, %p139
      %p141 = scmp.ne.s32.totalorder %s133, %s135
      %p142 = scmp.eq.s32.totalorder %s31, 1
      %p143 = por %p141, %p142
      %p144 = scmp.ne.s32.totalorder %s135, %s136
      %p145 = scmp.eq.s32.totalorder %s31, 0
      %p146 = por %p144, %p145
      %p147 = scmp.ne.s32.totalorder %s135, %s136
      %p148 = scmp.eq.s32.totalorder %s32, 1
      %p149 = por %p147, %p148
      %p151 = scmp.ne.s32.totalorder %s136, %s150
      %p152 = scmp.eq.s32.totalorder %s32, 0
      %p153 = por %p151, %p152
      %s155 = sadd.s32 %s154, 1
      %p158 = scmp.eq.s32.totalorder %s26, 1
      %p159 = scmp.ne.s32.totalorder %s154, %s156
      %p160 = scmp.eq.s32.totalorder %s26, 0
      %p161 = por %p159, %p160
      %p162 = scmp.ne.s32.totalorder %s154, %s156
      %p163 = scmp.eq.s32.totalorder %s31, 1
      %p164 = por %p162, %p163
      %p165 = scmp.ne.s32.totalorder %s156, %s157
      %p166 = scmp.eq.s32.totalorder %s31, 0
      %p167 = por %p165, %p166
      %p168 = scmp.ne.s32.totalorder %s156, %s157
      %p169 = scmp.eq.s32.totalorder %s32, 1
      %p170 = por %p168, %p169
      %p172 = scmp.ne.s32.totalorder %s157, %s171
      %p173 = scmp.eq.s32.totalorder %s32, 0
      %p174 = por %p172, %p173
      %s176 = sadd.s32 %s175, 1
      %p179 = scmp.eq.s32.totalorder %s26, 1
      %p180 = scmp.ne.s32.totalorder %s175, %s177
      %p181 = scmp.eq.s32.totalorder %s26, 0
      %p182 = por %p180, %p181
      %p183 = scmp.ne.s32.totalorder %s175, %s177
      %p184 = scmp.eq.s32.totalorder %s31, 1
      %p185 = por %p183, %p184
      %p186 = scmp.ne.s32.totalorder %s177, %s178
      %p187 = scmp.eq.s32.totalorder %s31, 0
      %p188 = por %p186, %p187
      %p189 = scmp.ne.s32.totalorder %s177, %s178
      %p190 = scmp.eq.s32.totalorder %s32, 1
      %p191 = por %p189, %p190
      %p193 = scmp.ne.s32.totalorder %s178, %s192
      %p194 = scmp.eq.s32.totalorder %s32, 0
      %p195 = por %p193, %p194
      %s197 = sadd.s32 %s196, 1
      %p200 = scmp.eq.s32.totalorder %s26, 1
      %p201 = scmp.ne.s32.totalorder %s196, %s198
      %p202 = scmp.eq.s32.totalorder %s26, 0
      %p203 = por %p201, %p202
      %p204 = scmp.ne.s32.totalorder %s196, %s198
      %p205 = scmp.eq.s32.totalorder %s31, 1
      %p206 = por %p204, %p205
      %p207 = scmp.ne.s32.totalorder %s198, %s199
      %p208 = scmp.eq.s32.totalorder %s31, 0
      %p209 = por %p207, %p208
      %p210 = scmp.ne.s32.totalorder %s198, %s199
      %p211 = scmp.eq.s32.totalorder %s32, 1
      %p212 = por %p210, %p211
      %p214 = scmp.ne.s32.totalorder %s199, %s213
      %p215 = scmp.eq.s32.totalorder %s32, 0
      %p216 = por %p214, %p215
      %s217 = ssub.s32 %s26, %s33
      %p218 = scmp.eq.s32.totalorder %s217, 0
      %s220 = sadd.s32 %s219, 1
      %s221 = scalar_select %p218, %s219, %s220
      %p224 = pneg %p218
      %p225 = scmp.eq.s32.totalorder %s26, 1
      %p226 = por %p224, %p225
      %p227 = scmp.ne.s32.totalorder %s219, %s222
      %p228 = scmp.eq.s32.totalorder %s26, 0
      %p229 = por %p227, %p228
      %p230 = scmp.ne.s32.totalorder %s219, %s222
      %p231 = scmp.eq.s32.totalorder %s31, 1
      %p232 = por %p230, %p231
      %p233 = scmp.ne.s32.totalorder %s222, %s223
      %p234 = scmp.eq.s32.totalorder %s31, 0
      %p235 = por %p233, %p234
      %p236 = scmp.ne.s32.totalorder %s222, %s223
      %p237 = scmp.eq.s32.totalorder %s32, 1
      %p238 = por %p236, %p237
      %p240 = scmp.ne.s32.totalorder %s223, %s239
      %p241 = scmp.eq.s32.totalorder %s32, 0
      %p242 = por %p240, %p241
      %p243 = scmp.le.s32.totalorder 1, %s26
      %p244 = scmp.lt.s32.totalorder %s26, 3
      %p245 = pnand %p243, %p244
      %p246 = pneg %p245
      // Predicated region
      $region9: #{tpu_custom_call.1} parent=5 // pred_check
        _
      $region10: #{tpu_custom_call.1} parent=5 // pred_check_branch
        %248 = sbr.rel (%p245) target = $region12
      $region11: #{tpu_custom_call.1} parent=5 // pred_region
        %s249 = ssub.s32 %s26, 1
        // Predicated region
        $region13: #{tpu_custom_call.1} parent=11 // pred_check
          %p250 = pneg %p125
        $region14: #{tpu_custom_call.1} parent=11 // pred_check_branch
          %252 = sbr.rel (%p250) target = $region16
        $region15: #{tpu_custom_call.1} parent=11 // pred_region
          %s254 = ssub.s32 1024, 1024
          %255 = vsyncadd [#allocation9], %s254
          %s256 = sshll.u32 [#allocation8], 4
          %s257 = int_to_ptr.vmem [resolvable:$true] %s256
          %262 = dma.hbm_to_vmem [thread:$0]  %s3, 1024, %s257, [#allocation9], 256, 256, 16
        $region16: #{tpu_custom_call.1} parent=11 // pred_fallthru
          _
        // Predicated region
        $region17: #{tpu_custom_call.1} parent=11 // pred_check
          %p263 = pneg %p146
        $region18: #{tpu_custom_call.1} parent=11 // pred_check_branch
          %265 = sbr.rel (%p263) target = $region20
        $region19: #{tpu_custom_call.1} parent=11 // pred_region
          %s267 = ssub.s32 512, 512
          %268 = vsyncadd [#allocation9], %s267
          %s269 = sshll.u32 [#allocation10], 4
          %s270 = int_to_ptr.vmem [resolvable:$true] %s269
          %275 = dma.hbm_to_vmem [thread:$0]  %s4, 512, %s270, [#allocation9], 128, 128, 8
        $region20: #{tpu_custom_call.1} parent=11 // pred_fallthru
          _
        // Predicated region
        $region21: #{tpu_custom_call.1} parent=11 // pred_check
          %p276 = pneg %p167
        $region22: #{tpu_custom_call.1} parent=11 // pred_check_branch
          %278 = sbr.rel (%p276) target = $region24
        $region23: #{tpu_custom_call.1} parent=11 // pred_region
          %s280 = ssub.s32 512, 512
          %281 = vsyncadd [#allocation12], %s280
          %s282 = sshll.u32 [#allocation11], 4
          %s283 = int_to_ptr.vmem [resolvable:$true] %s282
          %288 = dma.hbm_to_vmem [thread:$0]  %s5, 512, %s283, [#allocation12], 128, 128, 8
        $region24: #{tpu_custom_call.1} parent=11 // pred_fallthru
          _
        // Predicated region
        $region25: #{tpu_custom_call.1} parent=11 // pred_check
          %p289 = pneg %p188
        $region26: #{tpu_custom_call.1} parent=11 // pred_check_branch
          %291 = sbr.rel (%p289) target = $region28
        $region27: #{tpu_custom_call.1} parent=11 // pred_region
          %s293 = ssub.s32 512, 512
          %294 = vsyncadd [#allocation12], %s293
          %s295 = sshll.u32 [#allocation13], 4
          %s296 = int_to_ptr.vmem [resolvable:$true] %s295
          %301 = dma.hbm_to_vmem [thread:$0]  %s6, 512, %s296, [#allocation12], 128, 128, 8
        $region28: #{tpu_custom_call.1} parent=11 // pred_fallthru
          _
        // Predicated region
        $region29: #{tpu_custom_call.1} parent=11 // pred_check
          %p302 = pneg %p209
        $region30: #{tpu_custom_call.1} parent=11 // pred_check_branch
          %304 = sbr.rel (%p302) target = $region32
        $region31: #{tpu_custom_call.1} parent=11 // pred_region
          %s306 = ssub.s32 512, 512
          %307 = vsyncadd [#allocation15], %s306
          %s308 = sshll.u32 [#allocation14], 4
          %s309 = int_to_ptr.vmem [resolvable:$true] %s308
          %314 = dma.hbm_to_vmem [thread:$0]  %s7, 512, %s309, [#allocation15], 128, 128, 8
        $region32: #{tpu_custom_call.1} parent=11 // pred_fallthru
          _
      $region12: #{tpu_custom_call.1} parent=5 // pred_fallthru
        _
      %p315 = scmp.lt.s32.totalorder %s26, 2
      // Predicated region
      $region33: #{tpu_custom_call.1} parent=5 // pred_check
        %p316 = pneg %p315
      $region34: #{tpu_custom_call.1} parent=5 // pred_check_branch
        %318 = sbr.rel (%p316) target = $region36
      $region35: #{tpu_custom_call.1} parent=5 // pred_region
        // Predicated region
        $region37: #{tpu_custom_call.1} parent=35 // pred_check
          %p319 = pneg %p46
        $region38: #{tpu_custom_call.1} parent=35 // pred_check_branch
          %321 = sbr.rel (%p319) target = $region40
        $region39: #{tpu_custom_call.1} parent=35 // pred_region
          %s322 = sand.u32 %s36, 1
          %s323 = scalar_lea.sflag [#allocation3], %s322
          %s324 = sand.u32 %s36, 1
          %s325 = smul.addr %s324, 8
          %s326 = scalar_lea.vmem [#allocation2], %s325
          %s328 = ssub.s32 128, 128
          %329 = vsyncadd %s323, %s328
          %s330 = smul.addr %s26, 128
          %s331 = scalar_lea.hbm %s0, %s330
          %s333 = sshll.u32 %s326, 4
          %s334 = int_to_ptr.vmem [resolvable:$true] %s333
          %336 = dma.hbm_to_vmem [thread:$0]  %s331, 128, %s334, %s323
        $region40: #{tpu_custom_call.1} parent=35 // pred_fallthru
          _
        // Predicated region
        $region41: #{tpu_custom_call.1} parent=35 // pred_check
          %p337 = pneg %p72
        $region42: #{tpu_custom_call.1} parent=35 // pred_check_branch
          %339 = sbr.rel (%p337) target = $region44
        $region43: #{tpu_custom_call.1} parent=35 // pred_region
          %s340 = sand.u32 %s26, 1
          %s341 = scalar_lea.sflag [#allocation6], %s340
          %s342 = sand.u32 %s62, 1
          %s343 = smul.addr %s342, 8
          %s344 = scalar_lea.vmem [#allocation5], %s343
          %s346 = ssub.s32 128, 128
          %347 = vsyncadd %s341, %s346
          %s348 = smul.addr %s26, 128
          %s349 = scalar_lea.hbm %s1, %s348
          %s351 = sshll.u32 %s344, 4
          %s352 = int_to_ptr.vmem [resolvable:$true] %s351
          %354 = dma.hbm_to_vmem [thread:$0]  %s349, 128, %s352, %s341
        $region44: #{tpu_custom_call.1} parent=35 // pred_fallthru
          _
        // Predicated region
        $region45: #{tpu_custom_call.1} parent=35 // pred_check
          %p355 = pneg %p98
        $region46: #{tpu_custom_call.1} parent=35 // pred_check_branch
          %357 = sbr.rel (%p355) target = $region48
        $region47: #{tpu_custom_call.1} parent=35 // pred_region
          %s358 = sand.u32 %s26, 1
          %s359 = scalar_lea.sflag [#allocation6], %s358
          %s360 = sand.u32 %s88, 1
          %s361 = smul.addr %s360, 8
          %s362 = scalar_lea.vmem [#allocation7], %s361
          %s364 = ssub.s32 128, 128
          %365 = vsyncadd %s359, %s364
          %s366 = smul.addr %s26, 128
          %s367 = scalar_lea.hbm %s2, %s366
          %s369 = sshll.u32 %s362, 4
          %s370 = int_to_ptr.vmem [resolvable:$true] %s369
          %372 = dma.hbm_to_vmem [thread:$0]  %s367, 128, %s370, %s359
        $region48: #{tpu_custom_call.1} parent=35 // pred_fallthru
          _
      $region36: #{tpu_custom_call.1} parent=5 // pred_fallthru
        _
      %p373 = scmp.le.s32.totalorder 1, %s26
      %p374 = scmp.lt.s32.totalorder %s26, 3
      %p375 = pnand %p373, %p374
      %p376 = pneg %p375
      // Predicated region
      $region49: #{tpu_custom_call.1} parent=5 // pred_check
        _
      $region50: #{tpu_custom_call.1} parent=5 // pred_check_branch
        %378 = sbr.rel (%p375) target = $region52
      $region51: #{tpu_custom_call.1} parent=5 // pred_region
        %s379 = ssub.s32 %s26, 1
        %s380 = sand.u32 %s39, 1
        %s381 = scalar_lea.sflag [#allocation3], %s380
        %s382 = sand.u32 %s39, 1
        %s383 = smul.addr %s382, 8
        %s384 = scalar_lea.vmem [#allocation2], %s383
        // Predicated region
        $region53: #{tpu_custom_call.1} parent=51 // pred_check
          %p385 = pneg %p52
        $region54: #{tpu_custom_call.1} parent=51 // pred_check_branch
          %387 = sbr.rel (%p385) target = $region56
        $region55: #{tpu_custom_call.1} parent=51 // pred_region
          %388 = dma.done %s381, 128
        $region56: #{tpu_custom_call.1} parent=51 // pred_fallthru
          _
        %s389 = sand.u32 %s31, 1
        %s390 = scalar_lea.sflag [#allocation6], %s389
        %s391 = sand.u32 %s65, 1
        %s392 = smul.addr %s391, 8
        %s393 = scalar_lea.vmem [#allocation5], %s392
        // Predicated region
        $region57: #{tpu_custom_call.1} parent=51 // pred_check
          %p394 = pneg %p78
        $region58: #{tpu_custom_call.1} parent=51 // pred_check_branch
          %396 = sbr.rel (%p394) target = $region60
        $region59: #{tpu_custom_call.1} parent=51 // pred_region
          %397 = dma.done %s390, 128
        $region60: #{tpu_custom_call.1} parent=51 // pred_fallthru
          _
        %s398 = sand.u32 %s31, 1
        %s399 = scalar_lea.sflag [#allocation6], %s398
        %s400 = sand.u32 %s91, 1
        %s401 = smul.addr %s400, 8
        %s402 = scalar_lea.vmem [#allocation7], %s401
        // Predicated region
        $region61: #{tpu_custom_call.1} parent=51 // pred_check
          %p403 = pneg %p104
        $region62: #{tpu_custom_call.1} parent=51 // pred_check_branch
          %405 = sbr.rel (%p403) target = $region64
        $region63: #{tpu_custom_call.1} parent=51 // pred_region
          %406 = dma.done %s399, 128
        $region64: #{tpu_custom_call.1} parent=51 // pred_fallthru
          _
        // Predicated region
        $region65: #{tpu_custom_call.1} parent=51 // pred_check
          %p407 = pneg %p125
        $region66: #{tpu_custom_call.1} parent=51 // pred_check_branch
          %409 = sbr.rel (%p407) target = $region68
        $region67: #{tpu_custom_call.1} parent=51 // pred_region
          %410 = dma.done [#allocation9], 1024
        $region68: #{tpu_custom_call.1} parent=51 // pred_fallthru
          _
        // Predicated region
        $region69: #{tpu_custom_call.1} parent=51 // pred_check
          %p411 = pneg %p146
        $region70: #{tpu_custom_call.1} parent=51 // pred_check_branch
          %413 = sbr.rel (%p411) target = $region72
        $region71: #{tpu_custom_call.1} parent=51 // pred_region
          %414 = dma.done [#allocation9], 512
        $region72: #{tpu_custom_call.1} parent=51 // pred_fallthru
          _
        // Predicated region
        $region73: #{tpu_custom_call.1} parent=51 // pred_check
          %p415 = pneg %p167
        $region74: #{tpu_custom_call.1} parent=51 // pred_check_branch
          %417 = sbr.rel (%p415) target = $region76
        $region75: #{tpu_custom_call.1} parent=51 // pred_region
          %418 = dma.done [#allocation12], 512
        $region76: #{tpu_custom_call.1} parent=51 // pred_fallthru
          _
        // Predicated region
        $region77: #{tpu_custom_call.1} parent=51 // pred_check
          %p419 = pneg %p188
        $region78: #{tpu_custom_call.1} parent=51 // pred_check_branch
          %421 = sbr.rel (%p419) target = $region80
        $region79: #{tpu_custom_call.1} parent=51 // pred_region
          %422 = dma.done [#allocation12], 512
        $region80: #{tpu_custom_call.1} parent=51 // pred_fallthru
          _
        // Predicated region
        $region81: #{tpu_custom_call.1} parent=51 // pred_check
          %p423 = pneg %p209
        $region82: #{tpu_custom_call.1} parent=51 // pred_check_branch
          %425 = sbr.rel (%p423) target = $region84
        $region83: #{tpu_custom_call.1} parent=51 // pred_region
          %426 = dma.done [#allocation15], 512
        $region84: #{tpu_custom_call.1} parent=51 // pred_fallthru
          _
        %s427 = sand.u32 %s39, 1
        %s428 = scalar_lea.sflag [#allocation3], %s427
        %s429 = sand.u32 %s39, 1
        %s430 = smul.addr %s429, 8
        %s431 = scalar_lea.vmem [#allocation2], %s430
        %p432 = pneg %p52
        %p433 = pneg %p49
        %s434 = sand.u32 %s31, 1
        %s435 = scalar_lea.sflag [#allocation6], %s434
        %s436 = sand.u32 %s65, 1
        %s437 = smul.addr %s436, 8
        %s438 = scalar_lea.vmem [#allocation5], %s437
        %p439 = pneg %p78
        %p440 = pneg %p75
        %s441 = sand.u32 %s31, 1
        %s442 = scalar_lea.sflag [#allocation6], %s441
        %s443 = sand.u32 %s91, 1
        %s444 = smul.addr %s443, 8
        %s445 = scalar_lea.vmem [#allocation7], %s444
        %p446 = pneg %p104
        %p447 = pneg %p101
        %p448 = pneg %p125
        %p449 = pneg %p122
        %p450 = pneg %p146
        %p451 = pneg %p143
        %p452 = pneg %p167
        %p453 = pneg %p164
        %p454 = pneg %p188
        %p455 = pneg %p185
        %p456 = pneg %p209
        %p457 = pneg %p206
        %p458 = pneg %p235
        %p459 = pneg %p232
        %s460 = sand.u32 %s222, 1
        %s461 = scalar_lea.sflag [#allocation4], %s460
        %s462 = sand.u32 %s222, 1
        %s463 = scalar_lea.vmem [#allocation16], %s462
        %v464 = vld [vmem:[%s384] sm:$0xff]
        %v465 = vld [vmem:[%s393] sm:$0xff]
        %v466 = vld [vmem:[%s402] sm:$0xff]
        %v467 = vld [vmem:[#allocation8] sm:$0xff]
        %v468 = vld [vmem:[#allocation8 + $0x8] sm:$0xff]
        %v469 = vld [vmem:[#allocation8 + $0x10] sm:$0xff]
        %v470 = vld [vmem:[#allocation8 + $0x18] sm:$0xff]
        %v471 = vld [vmem:[#allocation8 + $0x20] sm:$0xff]
        %v472 = vld [vmem:[#allocation8 + $0x28] sm:$0xff]
        %v473 = vld [vmem:[#allocation8 + $0x30] sm:$0xff]
        %v474 = vld [vmem:[#allocation8 + $0x38] sm:$0xff]
        %vm475 = vcmask 261120
        %v477 = vsel %vm475, %v464, 0
        %479 = vmatprep.subr.mxu0 %v468
        %480 = vmatpush1.msra.mxu0 %v467
        %481 = vmatprep.subr.mxu0 %v470
        %482 = vmatpush1.msra.mxu0 %v469
        %483 = vmatprep.subr.mxu0 %v472
        %484 = vmatpush1.msra.mxu0 %v471
        %485 = vmatprep.subr.mxu0 %v474
        %486 = vmatpush1.msra.mxu0 %v473
        %487 = vmatprep.subr.mxu0 0.0
        %488 = vmatpush1.msra.mxu0 0.0
        %489 = vmatprep.subr.mxu0 0.0
        %490 = vmatpush1.msra.mxu0 0.0
        %491 = vmatprep.subr.mxu0 0.0
        %492 = vmatpush1.msra.mxu0 0.0
        %493 = vmatprep.subr.mxu0 0.0
        %494 = vmatpush1.msra.mxu0 0.0
        %495 = vmatprep.subr.mxu0 0.0
        %496 = vmatpush1.msra.mxu0 0.0
        %497 = vmatprep.subr.mxu0 0.0
        %498 = vmatpush1.msra.mxu0 0.0
        %499 = vmatprep.subr.mxu0 0.0
        %500 = vmatpush1.msra.mxu0 0.0
        %501 = vmatprep.subr.mxu0 0.0
        %502 = vmatpush1.msra.mxu0 0.0
        %503 = vmatprep.subr.mxu0 0.0
        %504 = vmatpush1.msra.mxu0 0.0
        %505 = vmatprep.subr.mxu0 0.0
        %506 = vmatpush1.msra.mxu0 0.0
        %507 = vmatprep.subr.mxu0 0.0
        %508 = vmatpush1.msra.mxu0 0.0
        %509 = vmatprep.subr.mxu0 0.0
        %510 = vmatpush1.msra.mxu0 0.0
        %511 = vmatprep.subr.mxu0 0.0
        %512 = vmatpush1.msra.mxu0 0.0
        %513 = vmatprep.subr.mxu0 0.0
        %514 = vmatpush1.msra.mxu0 0.0
        %515 = vmatprep.subr.mxu0 0.0
        %516 = vmatpush1.msra.mxu0 0.0
        %517 = vmatprep.subr.mxu0 0.0
        %518 = vmatpush1.msra.mxu0 0.0
        %519 = vmatprep.subr.mxu0 0.0
        %520 = vmatpush1.msra.mxu0 0.0
        %521 = vmatprep.subr.mxu0 0.0
        %522 = vmatpush1.msra.mxu0 0.0
        %523 = vmatprep.subr.mxu0 0.0
        %524 = vmatpush1.msra.mxu0 0.0
        %525 = vmatprep.subr.mxu0 0.0
        %526 = vmatpush1.msra.mxu0 0.0
        %527 = vmatprep.subr.mxu0 0.0
        %528 = vmatpush1.msra.mxu0 0.0
        %529 = vmatprep.subr.mxu0 0.0
        %530 = vmatpush1.msra.mxu0 0.0
        %531 = vmatprep.subr.mxu0 0.0
        %532 = vmatpush1.msra.mxu0 0.0
        %533 = vmatprep.subr.mxu0 0.0
        %534 = vmatpush1.msra.mxu0 0.0
        %535 = vmatprep.subr.mxu0 0.0
        %536 = vmatpush1.msra.mxu0 0.0
        %537 = vmatprep.subr.mxu0 0.0
        %538 = vmatpush1.msra.mxu0 0.0
        %539 = vmatprep.subr.mxu0 0.0
        %540 = vmatpush1.msra.mxu0 0.0
        %541 = vmatprep.subr.mxu0 0.0
        %542 = vmatpush1.msra.mxu0 0.0
        %543 = vmatprep.mubr.f32.mxu0 0.0
        %544 = vmatmul.mubr.f32.gmra.mrb[0].mxu0 %v477
        %v545 = vpop.f32.mrb[0].mxu0
        %v546 = vadd.f32 0.0, %v545
        %v547 = vpop.f32.mrb[0].mxu0
        %v548 = vadd.f32 0.0, %v547
        %549 = vdwg.mxu0
        %551 = vrot.lane.b32.xlu0 %v546, 96
        %v552 = vpop.permute.xlu0 %551
        %v553 = vsel %vm475, %v546, 0
        %v555 = vsel %vm475, %v552, 0
        %557 = vmatprep.subr.mxu0 0.0
        %558 = vmatpush1.xpose.msra.mxu0 %v555
        %559 = vmatprep.subr.mxu0 0.0
        %560 = vmatpush1.xpose.msra.mxu0 0.0
        %561 = vmatprep.subr.mxu0 0.0
        %562 = vmatpush1.xpose.msra.mxu0 0.0
        %563 = vmatprep.subr.mxu0 0.0
        %564 = vmatpush1.xpose.msra.mxu0 0.0
        %565 = vmatprep.subr.mxu0 0.0
        %566 = vmatpush1.xpose.msra.mxu0 0.0
        %567 = vmatprep.subr.mxu0 0.0
        %568 = vmatpush1.xpose.msra.mxu0 0.0
        %569 = vmatprep.subr.mxu0 0.0
        %570 = vmatpush1.xpose.msra.mxu0 0.0
        %571 = vmatprep.subr.mxu0 0.0
        %572 = vmatpush1.xpose.msra.mxu0 0.0
        %573 = vmatprep.subr.mxu0 0.0
        %574 = vmatpush1.xpose.msra.mxu0 0.0
        %575 = vmatprep.subr.mxu0 0.0
        %576 = vmatpush1.xpose.msra.mxu0 0.0
        %577 = vmatprep.subr.mxu0 0.0
        %578 = vmatpush1.xpose.msra.mxu0 0.0
        %579 = vmatprep.subr.mxu0 0.0
        %580 = vmatpush1.xpose.msra.mxu0 0.0
        %581 = vmatprep.subr.mxu0 0.0
        %582 = vmatpush1.xpose.msra.mxu0 0.0
        %583 = vmatprep.subr.mxu0 0.0
        %584 = vmatpush1.xpose.msra.mxu0 0.0
        %585 = vmatprep.subr.mxu0 0.0
        %586 = vmatpush1.xpose.msra.mxu0 0.0
        %587 = vmatprep.subr.mxu0 0.0
        %588 = vmatpush1.xpose.msra.mxu0 0.0
        %589 = vmatprep.subr.mxu0 0.0
        %590 = vmatpush1.xpose.msra.mxu0 0.0
        %591 = vmatprep.subr.mxu0 0.0
        %592 = vmatpush1.xpose.msra.mxu0 0.0
        %593 = vmatprep.subr.mxu0 0.0
        %594 = vmatpush1.xpose.msra.mxu0 0.0
        %595 = vmatprep.subr.mxu0 0.0
        %596 = vmatpush1.xpose.msra.mxu0 0.0
        %597 = vmatprep.subr.mxu0 0.0
        %598 = vmatpush1.xpose.msra.mxu0 0.0
        %599 = vmatprep.subr.mxu0 0.0
        %600 = vmatpush1.xpose.msra.mxu0 0.0
        %601 = vmatprep.subr.mxu0 0.0
        %602 = vmatpush1.xpose.msra.mxu0 0.0
        %603 = vmatprep.subr.mxu0 0.0
        %604 = vmatpush1.xpose.msra.mxu0 0.0
        %605 = vmatprep.subr.mxu0 0.0
        %606 = vmatpush1.xpose.msra.mxu0 0.0
        %607 = vmatprep.subr.mxu0 0.0
        %608 = vmatpush1.xpose.msra.mxu0 0.0
        %609 = vmatprep.subr.mxu0 0.0
        %610 = vmatpush1.xpose.msra.mxu0 0.0
        %611 = vmatprep.subr.mxu0 0.0
        %612 = vmatpush1.xpose.msra.mxu0 0.0
        %613 = vmatprep.subr.mxu0 0.0
        %614 = vmatpush1.xpose.msra.mxu0 0.0
        %615 = vmatprep.subr.mxu0 0.0
        %616 = vmatpush1.xpose.msra.mxu0 0.0
        %617 = vmatprep.subr.mxu0 0.0
        %618 = vmatpush1.xpose.msra.mxu0 0.0
        %619 = vmatprep.subr.mxu0 0.0
        %620 = vmatpush1.xpose.msra.mxu0 0.0
        %621 = vmatprep.mubr.f32.mxu0 0.0
        %622 = vmatmul.mubr.f32.gmra.mrb[0].mxu0 %v553
        %v623 = vpop.f32.mrb[0].mxu0
        %v624 = vadd.f32 0.0, %v623
        %v625 = vpop.f32.mrb[0].mxu0
        %626 = vdwg.mxu0
        %vm627 = vcmask 64512
        %v628 = vsel %vm627, %v624, -inf
        %629 = vmax.xlane.f32.xlu0 %v628
        %v630 = vpop.xlane.xlu0 %629
        %v631 = vsub.f32 %v624, %v630
        %v632 = vmul.f32 %v631, 1.442695
        %v633 = vpow.pop %v632
        %v634 = vsel %vm627, %v633, 0.0
        %635 = vadd.xlane.f32.xlu0 %v634
        %v636 = vpop.xlane.xlu0 %635
        %v637 = vrcp.pop %v636
        %v638 = vmul.f32 %v633, %v637
        %639 = vrot.lane.b32.xlu0 %v546, 64
        %v640 = vpop.permute.xlu0 %639
        %v643 = vsel %vm627, %v638, 0
        %645 = vmatprep.subr.mxu0 0.0
        %646 = vmatpush1.msra.mxu0 %v640
        %647 = vmatprep.subr.mxu0 0.0
        %648 = vmatpush1.msra.mxu0 0.0
        %649 = vmatprep.subr.mxu0 0.0
        %650 = vmatpush1.msra.mxu0 0.0
        %651 = vmatprep.subr.mxu0 0.0
        %652 = vmatpush1.msra.mxu0 0.0
        %653 = vmatprep.subr.mxu0 0.0
        %654 = vmatpush1.msra.mxu0 0.0
        %655 = vmatprep.subr.mxu0 0.0
        %656 = vmatpush1.msra.mxu0 0.0
        %657 = vmatprep.subr.mxu0 0.0
        %658 = vmatpush1.msra.mxu0 0.0
        %659 = vmatprep.subr.mxu0 0.0
        %660 = vmatpush1.msra.mxu0 0.0
        %661 = vmatprep.subr.mxu0 0.0
        %662 = vmatpush1.msra.mxu0 0.0
        %663 = vmatprep.subr.mxu0 0.0
        %664 = vmatpush1.msra.mxu0 0.0
        %665 = vmatprep.subr.mxu0 0.0
        %666 = vmatpush1.msra.mxu0 0.0
        %667 = vmatprep.subr.mxu0 0.0
        %668 = vmatpush1.msra.mxu0 0.0
        %669 = vmatprep.subr.mxu0 0.0
        %670 = vmatpush1.msra.mxu0 0.0
        %671 = vmatprep.subr.mxu0 0.0
        %672 = vmatpush1.msra.mxu0 0.0
        %673 = vmatprep.subr.mxu0 0.0
        %674 = vmatpush1.msra.mxu0 0.0
        %675 = vmatprep.subr.mxu0 0.0
        %676 = vmatpush1.msra.mxu0 0.0
        %677 = vmatprep.subr.mxu0 0.0
        %678 = vmatpush1.msra.mxu0 0.0
        %679 = vmatprep.subr.mxu0 0.0
        %680 = vmatpush1.msra.mxu0 0.0
        %681 = vmatprep.subr.mxu0 0.0
        %682 = vmatpush1.msra.mxu0 0.0
        %683 = vmatprep.subr.mxu0 0.0
        %684 = vmatpush1.msra.mxu0 0.0
        %685 = vmatprep.subr.mxu0 0.0
        %686 = vmatpush1.msra.mxu0 0.0
        %687 = vmatprep.subr.mxu0 0.0
        %688 = vmatpush1.msra.mxu0 0.0
        %689 = vmatprep.subr.mxu0 0.0
        %690 = vmatpush1.msra.mxu0 0.0
        %691 = vmatprep.subr.mxu0 0.0
        %692 = vmatpush1.msra.mxu0 0.0
        %693 = vmatprep.subr.mxu0 0.0
        %694 = vmatpush1.msra.mxu0 0.0
        %695 = vmatprep.subr.mxu0 0.0
        %696 = vmatpush1.msra.mxu0 0.0
        %697 = vmatprep.subr.mxu0 0.0
        %698 = vmatpush1.msra.mxu0 0.0
        %699 = vmatprep.subr.mxu0 0.0
        %700 = vmatpush1.msra.mxu0 0.0
        %701 = vmatprep.subr.mxu0 0.0
        %702 = vmatpush1.msra.mxu0 0.0
        %703 = vmatprep.subr.mxu0 0.0
        %704 = vmatpush1.msra.mxu0 0.0
        %705 = vmatprep.subr.mxu0 0.0
        %706 = vmatpush1.msra.mxu0 0.0
        %707 = vmatprep.subr.mxu0 0.0
        %708 = vmatpush1.msra.mxu0 0.0
        %709 = vmatprep.mubr.f32.mxu0 0.0
        %710 = vmatmul.mubr.f32.gmra.mrb[0].mxu0 %v643
        %v711 = vpop.f32.mrb[0].mxu0
        %v712 = vadd.f32 0.0, %v711
        %v713 = vpop.f32.mrb[0].mxu0
        %714 = vdwg.mxu0
        %v715 = vmax.f32 %v712, 0.0
        %716 = vrot.lane.b32.xlu0 %v546, 32
        %v717 = vpop.permute.xlu0 %716
        %v720 = vsel %vm627, %v465, 0
        %722 = vmatprep.subr.mxu0 0.0
        %723 = vmatpush1.msra.mxu0 %v717
        %724 = vmatprep.subr.mxu0 0.0
        %725 = vmatpush1.msra.mxu0 0.0
        %726 = vmatprep.subr.mxu0 0.0
        %727 = vmatpush1.msra.mxu0 0.0
        %728 = vmatprep.subr.mxu0 0.0
        %729 = vmatpush1.msra.mxu0 0.0
        %730 = vmatprep.subr.mxu0 0.0
        %731 = vmatpush1.msra.mxu0 0.0
        %732 = vmatprep.subr.mxu0 0.0
        %733 = vmatpush1.msra.mxu0 0.0
        %734 = vmatprep.subr.mxu0 0.0
        %735 = vmatpush1.msra.mxu0 0.0
        %736 = vmatprep.subr.mxu0 0.0
        %737 = vmatpush1.msra.mxu0 0.0
        %738 = vmatprep.subr.mxu0 0.0
        %739 = vmatpush1.msra.mxu0 0.0
        %740 = vmatprep.subr.mxu0 0.0
        %741 = vmatpush1.msra.mxu0 0.0
        %742 = vmatprep.subr.mxu0 0.0
        %743 = vmatpush1.msra.mxu0 0.0
        %744 = vmatprep.subr.mxu0 0.0
        %745 = vmatpush1.msra.mxu0 0.0
        %746 = vmatprep.subr.mxu0 0.0
        %747 = vmatpush1.msra.mxu0 0.0
        %748 = vmatprep.subr.mxu0 0.0
        %749 = vmatpush1.msra.mxu0 0.0
        %750 = vmatprep.subr.mxu0 0.0
        %751 = vmatpush1.msra.mxu0 0.0
        %752 = vmatprep.subr.mxu0 0.0
        %753 = vmatpush1.msra.mxu0 0.0
        %754 = vmatprep.subr.mxu0 0.0
        %755 = vmatpush1.msra.mxu0 0.0
        %756 = vmatprep.subr.mxu0 0.0
        %757 = vmatpush1.msra.mxu0 0.0
        %758 = vmatprep.subr.mxu0 0.0
        %759 = vmatpush1.msra.mxu0 0.0
        %760 = vmatprep.subr.mxu0 0.0
        %761 = vmatpush1.msra.mxu0 0.0
        %762 = vmatprep.subr.mxu0 0.0
        %763 = vmatpush1.msra.mxu0 0.0
        %764 = vmatprep.subr.mxu0 0.0
        %765 = vmatpush1.msra.mxu0 0.0
        %766 = vmatprep.subr.mxu0 0.0
        %767 = vmatpush1.msra.mxu0 0.0
        %768 = vmatprep.subr.mxu0 0.0
        %769 = vmatpush1.msra.mxu0 0.0
        %770 = vmatprep.subr.mxu0 0.0
        %771 = vmatpush1.msra.mxu0 0.0
        %772 = vmatprep.subr.mxu0 0.0
        %773 = vmatpush1.msra.mxu0 0.0
        %774 = vmatprep.subr.mxu0 0.0
        %775 = vmatpush1.msra.mxu0 0.0
        %776 = vmatprep.subr.mxu0 0.0
        %777 = vmatpush1.msra.mxu0 0.0
        %778 = vmatprep.subr.mxu0 0.0
        %779 = vmatpush1.msra.mxu0 0.0
        %780 = vmatprep.subr.mxu0 0.0
        %781 = vmatpush1.msra.mxu0 0.0
        %782 = vmatprep.subr.mxu0 0.0
        %783 = vmatpush1.msra.mxu0 0.0
        %784 = vmatprep.subr.mxu0 0.0
        %785 = vmatpush1.msra.mxu0 0.0
        %786 = vmatprep.mubr.f32.mxu0 0.0
        %787 = vmatmul.mubr.f32.gmra.mrb[0].mxu0 %v720
        %v788 = vpop.f32.mrb[0].mxu0
        %v789 = vadd.f32 0.0, %v788
        %v790 = vpop.f32.mrb[0].mxu0
        %791 = vdwg.mxu0
        %v792 = vmax.f32 %v789, 0.0
        %v794 = vsel %vm627, %v466, 0
        %796 = vmatprep.subr.mxu0 0.0
        %797 = vmatpush1.msra.mxu0 %v548
        %798 = vmatprep.subr.mxu0 0.0
        %799 = vmatpush1.msra.mxu0 0.0
        %800 = vmatprep.subr.mxu0 0.0
        %801 = vmatpush1.msra.mxu0 0.0
        %802 = vmatprep.subr.mxu0 0.0
        %803 = vmatpush1.msra.mxu0 0.0
        %804 = vmatprep.subr.mxu0 0.0
        %805 = vmatpush1.msra.mxu0 0.0
        %806 = vmatprep.subr.mxu0 0.0
        %807 = vmatpush1.msra.mxu0 0.0
        %808 = vmatprep.subr.mxu0 0.0
        %809 = vmatpush1.msra.mxu0 0.0
        %810 = vmatprep.subr.mxu0 0.0
        %811 = vmatpush1.msra.mxu0 0.0
        %812 = vmatprep.subr.mxu0 0.0
        %813 = vmatpush1.msra.mxu0 0.0
        %814 = vmatprep.subr.mxu0 0.0
        %815 = vmatpush1.msra.mxu0 0.0
        %816 = vmatprep.subr.mxu0 0.0
        %817 = vmatpush1.msra.mxu0 0.0
        %818 = vmatprep.subr.mxu0 0.0
        %819 = vmatpush1.msra.mxu0 0.0
        %820 = vmatprep.subr.mxu0 0.0
        %821 = vmatpush1.msra.mxu0 0.0
        %822 = vmatprep.subr.mxu0 0.0
        %823 = vmatpush1.msra.mxu0 0.0
        %824 = vmatprep.subr.mxu0 0.0
        %825 = vmatpush1.msra.mxu0 0.0
        %826 = vmatprep.subr.mxu0 0.0
        %827 = vmatpush1.msra.mxu0 0.0
        %828 = vmatprep.subr.mxu0 0.0
        %829 = vmatpush1.msra.mxu0 0.0
        %830 = vmatprep.subr.mxu0 0.0
        %831 = vmatpush1.msra.mxu0 0.0
        %832 = vmatprep.subr.mxu0 0.0
        %833 = vmatpush1.msra.mxu0 0.0
        %834 = vmatprep.subr.mxu0 0.0
        %835 = vmatpush1.msra.mxu0 0.0
        %836 = vmatprep.subr.mxu0 0.0
        %837 = vmatpush1.msra.mxu0 0.0
        %838 = vmatprep.subr.mxu0 0.0
        %839 = vmatpush1.msra.mxu0 0.0
        %840 = vmatprep.subr.mxu0 0.0
        %841 = vmatpush1.msra.mxu0 0.0
        %842 = vmatprep.subr.mxu0 0.0
        %843 = vmatpush1.msra.mxu0 0.0
        %844 = vmatprep.subr.mxu0 0.0
        %845 = vmatpush1.msra.mxu0 0.0
        %846 = vmatprep.subr.mxu0 0.0
        %847 = vmatpush1.msra.mxu0 0.0
        %848 = vmatprep.subr.mxu0 0.0
        %849 = vmatpush1.msra.mxu0 0.0
        %850 = vmatprep.subr.mxu0 0.0
        %851 = vmatpush1.msra.mxu0 0.0
        %852 = vmatprep.subr.mxu0 0.0
        %853 = vmatpush1.msra.mxu0 0.0
        %854 = vmatprep.subr.mxu0 0.0
        %855 = vmatpush1.msra.mxu0 0.0
        %856 = vmatprep.subr.mxu0 0.0
        %857 = vmatpush1.msra.mxu0 0.0
        %858 = vmatprep.subr.mxu0 0.0
        %859 = vmatpush1.msra.mxu0 0.0
        %860 = vmatprep.mubr.f32.mxu0 0.0
        %861 = vmatmul.mubr.f32.gmra.mrb[0].mxu0 %v794
        %v862 = vpop.f32.mrb[0].mxu0
        %v863 = vadd.f32 0.0, %v862
        %v864 = vpop.f32.mrb[0].mxu0
        %865 = vdwg.mxu0
        %v866 = vmax.f32 %v863, 0.0
        %v867 = vadd.f32 %v792, %v866
        %v868 = vld [vmem:[#allocation10] sm:$0xff]
        %v869 = vld [vmem:[#allocation10 + $0x8] sm:$0xff]
        %v870 = vld [vmem:[#allocation10 + $0x10] sm:$0xff]
        %v871 = vld [vmem:[#allocation10 + $0x18] sm:$0xff]
        %v873 = vsel %vm475, %v715, 0
        %875 = vmatprep.subr.mxu0 0.0
        %876 = vmatpush1.msra.mxu0 %v868
        %877 = vmatprep.subr.mxu0 0.0
        %878 = vmatpush1.msra.mxu0 %v869
        %879 = vmatprep.subr.mxu0 0.0
        %880 = vmatpush1.msra.mxu0 %v870
        %881 = vmatprep.subr.mxu0 0.0
        %882 = vmatpush1.msra.mxu0 %v871
        %883 = vmatprep.subr.mxu0 0.0
        %884 = vmatpush1.msra.mxu0 0.0
        %885 = vmatprep.subr.mxu0 0.0
        %886 = vmatpush1.msra.mxu0 0.0
        %887 = vmatprep.subr.mxu0 0.0
        %888 = vmatpush1.msra.mxu0 0.0
        %889 = vmatprep.subr.mxu0 0.0
        %890 = vmatpush1.msra.mxu0 0.0
        %891 = vmatprep.subr.mxu0 0.0
        %892 = vmatpush1.msra.mxu0 0.0
        %893 = vmatprep.subr.mxu0 0.0
        %894 = vmatpush1.msra.mxu0 0.0
        %895 = vmatprep.subr.mxu0 0.0
        %896 = vmatpush1.msra.mxu0 0.0
        %897 = vmatprep.subr.mxu0 0.0
        %898 = vmatpush1.msra.mxu0 0.0
        %899 = vmatprep.subr.mxu0 0.0
        %900 = vmatpush1.msra.mxu0 0.0
        %901 = vmatprep.subr.mxu0 0.0
        %902 = vmatpush1.msra.mxu0 0.0
        %903 = vmatprep.subr.mxu0 0.0
        %904 = vmatpush1.msra.mxu0 0.0
        %905 = vmatprep.subr.mxu0 0.0
        %906 = vmatpush1.msra.mxu0 0.0
        %907 = vmatprep.subr.mxu0 0.0
        %908 = vmatpush1.msra.mxu0 0.0
        %909 = vmatprep.subr.mxu0 0.0
        %910 = vmatpush1.msra.mxu0 0.0
        %911 = vmatprep.subr.mxu0 0.0
        %912 = vmatpush1.msra.mxu0 0.0
        %913 = vmatprep.subr.mxu0 0.0
        %914 = vmatpush1.msra.mxu0 0.0
        %915 = vmatprep.subr.mxu0 0.0
        %916 = vmatpush1.msra.mxu0 0.0
        %917 = vmatprep.subr.mxu0 0.0
        %918 = vmatpush1.msra.mxu0 0.0
        %919 = vmatprep.subr.mxu0 0.0
        %920 = vmatpush1.msra.mxu0 0.0
        %921 = vmatprep.subr.mxu0 0.0
        %922 = vmatpush1.msra.mxu0 0.0
        %923 = vmatprep.subr.mxu0 0.0
        %924 = vmatpush1.msra.mxu0 0.0
        %925 = vmatprep.subr.mxu0 0.0
        %926 = vmatpush1.msra.mxu0 0.0
        %927 = vmatprep.subr.mxu0 0.0
        %928 = vmatpush1.msra.mxu0 0.0
        %929 = vmatprep.subr.mxu0 0.0
        %930 = vmatpush1.msra.mxu0 0.0
        %931 = vmatprep.subr.mxu0 0.0
        %932 = vmatpush1.msra.mxu0 0.0
        %933 = vmatprep.subr.mxu0 0.0
        %934 = vmatpush1.msra.mxu0 0.0
        %935 = vmatprep.subr.mxu0 0.0
        %936 = vmatpush1.msra.mxu0 0.0
        %937 = vmatprep.subr.mxu0 0.0
        %938 = vmatpush1.msra.mxu0 0.0
        %939 = vmatprep.mubr.f32.mxu0 0.0
        %940 = vmatmul.mubr.f32.gmra.mrb[0].mxu0 %v873
        %v941 = vpop.f32.mrb[0].mxu0
        %v942 = vadd.f32 0.0, %v941
        %v943 = vpop.f32.mrb[0].mxu0
        %944 = vdwg.mxu0
        %945 = vmatprep.subr.mxu0 0.0
        %946 = vmatpush1.msra.mxu0 %v942
        %947 = vmatprep.subr.mxu0 0.0
        %948 = vmatpush1.msra.mxu0 0.0
        %949 = vmatprep.subr.mxu0 0.0
        %950 = vmatpush1.msra.mxu0 0.0
        %951 = vmatprep.subr.mxu0 0.0
        %952 = vmatpush1.msra.mxu0 0.0
        %953 = vmatprep.subr.mxu0 0.0
        %954 = vmatpush1.msra.mxu0 0.0
        %955 = vmatprep.subr.mxu0 0.0
        %956 = vmatpush1.msra.mxu0 0.0
        %957 = vmatprep.subr.mxu0 0.0
        %958 = vmatpush1.msra.mxu0 0.0
        %959 = vmatprep.subr.mxu0 0.0
        %960 = vmatpush1.msra.mxu0 0.0
        %961 = vmatprep.subr.mxu0 0.0
        %962 = vmatpush1.msra.mxu0 0.0
        %963 = vmatprep.subr.mxu0 0.0
        %964 = vmatpush1.msra.mxu0 0.0
        %965 = vmatprep.subr.mxu0 0.0
        %966 = vmatpush1.msra.mxu0 0.0
        %967 = vmatprep.subr.mxu0 0.0
        %968 = vmatpush1.msra.mxu0 0.0
        %969 = vmatprep.subr.mxu0 0.0
        %970 = vmatpush1.msra.mxu0 0.0
        %971 = vmatprep.subr.mxu0 0.0
        %972 = vmatpush1.msra.mxu0 0.0
        %973 = vmatprep.subr.mxu0 0.0
        %974 = vmatpush1.msra.mxu0 0.0
        %975 = vmatprep.subr.mxu0 0.0
        %976 = vmatpush1.msra.mxu0 0.0
        %977 = vmatprep.subr.mxu0 0.0
        %978 = vmatpush1.msra.mxu0 0.0
        %979 = vmatprep.subr.mxu0 0.0
        %980 = vmatpush1.msra.mxu0 0.0
        %981 = vmatprep.subr.mxu0 0.0
        %982 = vmatpush1.msra.mxu0 0.0
        %983 = vmatprep.subr.mxu0 0.0
        %984 = vmatpush1.msra.mxu0 0.0
        %985 = vmatprep.subr.mxu0 0.0
        %986 = vmatpush1.msra.mxu0 0.0
        %987 = vmatprep.subr.mxu0 0.0
        %988 = vmatpush1.msra.mxu0 0.0
        %989 = vmatprep.subr.mxu0 0.0
        %990 = vmatpush1.msra.mxu0 0.0
        %991 = vmatprep.subr.mxu0 0.0
        %992 = vmatpush1.msra.mxu0 0.0
        %993 = vmatprep.subr.mxu0 0.0
        %994 = vmatpush1.msra.mxu0 0.0
        %995 = vmatprep.subr.mxu0 0.0
        %996 = vmatpush1.msra.mxu0 0.0
        %997 = vmatprep.subr.mxu0 0.0
        %998 = vmatpush1.msra.mxu0 0.0
        %999 = vmatprep.subr.mxu0 0.0
        %1000 = vmatpush1.msra.mxu0 0.0
        %1001 = vmatprep.subr.mxu0 0.0
        %1002 = vmatpush1.msra.mxu0 0.0
        %1003 = vmatprep.subr.mxu0 0.0
        %1004 = vmatpush1.msra.mxu0 0.0
        %1005 = vmatprep.subr.mxu0 0.0
        %1006 = vmatpush1.msra.mxu0 0.0
        %1007 = vmatprep.subr.mxu0 0.0
        %1008 = vmatpush1.msra.mxu0 0.0
        %1009 = vmatprep.mubr.f32.mxu0 0.0
        %1010 = vmatmul.mubr.f32.gmra.mrb[0].mxu0 %v643
        %v1011 = vpop.f32.mrb[0].mxu0
        %v1012 = vadd.f32 0.0, %v1011
        %v1013 = vpop.f32.mrb[0].mxu0
        %1014 = vdwg.mxu0
        %v1015 = vmax.f32 %v1012, 0.0
        %v1016 = vld [vmem:[#allocation11] sm:$0xff]
        %v1017 = vld [vmem:[#allocation11 + $0x8] sm:$0xff]
        %v1018 = vld [vmem:[#allocation11 + $0x10] sm:$0xff]
        %v1019 = vld [vmem:[#allocation11 + $0x18] sm:$0xff]
        %v1021 = vsel %vm475, %v867, 0
        %1023 = vmatprep.subr.mxu0 0.0
        %1024 = vmatpush1.msra.mxu0 %v1016
        %1025 = vmatprep.subr.mxu0 0.0
        %1026 = vmatpush1.msra.mxu0 %v1017
        %1027 = vmatprep.subr.mxu0 0.0
        %1028 = vmatpush1.msra.mxu0 %v1018
        %1029 = vmatprep.subr.mxu0 0.0
        %1030 = vmatpush1.msra.mxu0 %v1019
        %1031 = vmatprep.subr.mxu0 0.0
        %1032 = vmatpush1.msra.mxu0 0.0
        %1033 = vmatprep.subr.mxu0 0.0
        %1034 = vmatpush1.msra.mxu0 0.0
        %1035 = vmatprep.subr.mxu0 0.0
        %1036 = vmatpush1.msra.mxu0 0.0
        %1037 = vmatprep.subr.mxu0 0.0
        %1038 = vmatpush1.msra.mxu0 0.0
        %1039 = vmatprep.subr.mxu0 0.0
        %1040 = vmatpush1.msra.mxu0 0.0
        %1041 = vmatprep.subr.mxu0 0.0
        %1042 = vmatpush1.msra.mxu0 0.0
        %1043 = vmatprep.subr.mxu0 0.0
        %1044 = vmatpush1.msra.mxu0 0.0
        %1045 = vmatprep.subr.mxu0 0.0
        %1046 = vmatpush1.msra.mxu0 0.0
        %1047 = vmatprep.subr.mxu0 0.0
        %1048 = vmatpush1.msra.mxu0 0.0
        %1049 = vmatprep.subr.mxu0 0.0
        %1050 = vmatpush1.msra.mxu0 0.0
        %1051 = vmatprep.subr.mxu0 0.0
        %1052 = vmatpush1.msra.mxu0 0.0
        %1053 = vmatprep.subr.mxu0 0.0
        %1054 = vmatpush1.msra.mxu0 0.0
        %1055 = vmatprep.subr.mxu0 0.0
        %1056 = vmatpush1.msra.mxu0 0.0
        %1057 = vmatprep.subr.mxu0 0.0
        %1058 = vmatpush1.msra.mxu0 0.0
        %1059 = vmatprep.subr.mxu0 0.0
        %1060 = vmatpush1.msra.mxu0 0.0
        %1061 = vmatprep.subr.mxu0 0.0
        %1062 = vmatpush1.msra.mxu0 0.0
        %1063 = vmatprep.subr.mxu0 0.0
        %1064 = vmatpush1.msra.mxu0 0.0
        %1065 = vmatprep.subr.mxu0 0.0
        %1066 = vmatpush1.msra.mxu0 0.0
        %1067 = vmatprep.subr.mxu0 0.0
        %1068 = vmatpush1.msra.mxu0 0.0
        %1069 = vmatprep.subr.mxu0 0.0
        %1070 = vmatpush1.msra.mxu0 0.0
        %1071 = vmatprep.subr.mxu0 0.0
        %1072 = vmatpush1.msra.mxu0 0.0
        %1073 = vmatprep.subr.mxu0 0.0
        %1074 = vmatpush1.msra.mxu0 0.0
        %1075 = vmatprep.subr.mxu0 0.0
        %1076 = vmatpush1.msra.mxu0 0.0
        %1077 = vmatprep.subr.mxu0 0.0
        %1078 = vmatpush1.msra.mxu0 0.0
        %1079 = vmatprep.subr.mxu0 0.0
        %1080 = vmatpush1.msra.mxu0 0.0
        %1081 = vmatprep.subr.mxu0 0.0
        %1082 = vmatpush1.msra.mxu0 0.0
        %1083 = vmatprep.subr.mxu0 0.0
        %1084 = vmatpush1.msra.mxu0 0.0
        %1085 = vmatprep.subr.mxu0 0.0
        %1086 = vmatpush1.msra.mxu0 0.0
        %1087 = vmatprep.mubr.f32.mxu0 0.0
        %1088 = vmatmul.mubr.f32.gmra.mrb[0].mxu0 %v1021
        %v1089 = vpop.f32.mrb[0].mxu0
        %v1090 = vadd.f32 0.0, %v1089
        %v1091 = vpop.f32.mrb[0].mxu0
        %1092 = vdwg.mxu0
        %1093 = vmatprep.subr.mxu0 0.0
        %1094 = vmatpush1.msra.mxu0 %v1090
        %1095 = vmatprep.subr.mxu0 0.0
        %1096 = vmatpush1.msra.mxu0 0.0
        %1097 = vmatprep.subr.mxu0 0.0
        %1098 = vmatpush1.msra.mxu0 0.0
        %1099 = vmatprep.subr.mxu0 0.0
        %1100 = vmatpush1.msra.mxu0 0.0
        %1101 = vmatprep.subr.mxu0 0.0
        %1102 = vmatpush1.msra.mxu0 0.0
        %1103 = vmatprep.subr.mxu0 0.0
        %1104 = vmatpush1.msra.mxu0 0.0
        %1105 = vmatprep.subr.mxu0 0.0
        %1106 = vmatpush1.msra.mxu0 0.0
        %1107 = vmatprep.subr.mxu0 0.0
        %1108 = vmatpush1.msra.mxu0 0.0
        %1109 = vmatprep.subr.mxu0 0.0
        %1110 = vmatpush1.msra.mxu0 0.0
        %1111 = vmatprep.subr.mxu0 0.0
        %1112 = vmatpush1.msra.mxu0 0.0
        %1113 = vmatprep.subr.mxu0 0.0
        %1114 = vmatpush1.msra.mxu0 0.0
        %1115 = vmatprep.subr.mxu0 0.0
        %1116 = vmatpush1.msra.mxu0 0.0
        %1117 = vmatprep.subr.mxu0 0.0
        %1118 = vmatpush1.msra.mxu0 0.0
        %1119 = vmatprep.subr.mxu0 0.0
        %1120 = vmatpush1.msra.mxu0 0.0
        %1121 = vmatprep.subr.mxu0 0.0
        %1122 = vmatpush1.msra.mxu0 0.0
        %1123 = vmatprep.subr.mxu0 0.0
        %1124 = vmatpush1.msra.mxu0 0.0
        %1125 = vmatprep.subr.mxu0 0.0
        %1126 = vmatpush1.msra.mxu0 0.0
        %1127 = vmatprep.subr.mxu0 0.0
        %1128 = vmatpush1.msra.mxu0 0.0
        %1129 = vmatprep.subr.mxu0 0.0
        %1130 = vmatpush1.msra.mxu0 0.0
        %1131 = vmatprep.subr.mxu0 0.0
        %1132 = vmatpush1.msra.mxu0 0.0
        %1133 = vmatprep.subr.mxu0 0.0
        %1134 = vmatpush1.msra.mxu0 0.0
        %1135 = vmatprep.subr.mxu0 0.0
        %1136 = vmatpush1.msra.mxu0 0.0
        %1137 = vmatprep.subr.mxu0 0.0
        %1138 = vmatpush1.msra.mxu0 0.0
        %1139 = vmatprep.subr.mxu0 0.0
        %1140 = vmatpush1.msra.mxu0 0.0
        %1141 = vmatprep.subr.mxu0 0.0
        %1142 = vmatpush1.msra.mxu0 0.0
        %1143 = vmatprep.subr.mxu0 0.0
        %1144 = vmatpush1.msra.mxu0 0.0
        %1145 = vmatprep.subr.mxu0 0.0
        %1146 = vmatpush1.msra.mxu0 0.0
        %1147 = vmatprep.subr.mxu0 0.0
        %1148 = vmatpush1.msra.mxu0 0.0
        %1149 = vmatprep.subr.mxu0 0.0
        %1150 = vmatpush1.msra.mxu0 0.0
        %1151 = vmatprep.subr.mxu0 0.0
        %1152 = vmatpush1.msra.mxu0 0.0
        %1153 = vmatprep.subr.mxu0 0.0
        %1154 = vmatpush1.msra.mxu0 0.0
        %1155 = vmatprep.subr.mxu0 0.0
        %1156 = vmatpush1.msra.mxu0 0.0
        %1157 = vmatprep.mubr.f32.mxu0 0.0
        %1158 = vmatmul.mubr.f32.gmra.mrb[0].mxu0 %v720
        %v1159 = vpop.f32.mrb[0].mxu0
        %v1160 = vadd.f32 0.0, %v1159
        %v1161 = vpop.f32.mrb[0].mxu0
        %1162 = vdwg.mxu0
        %v1163 = vmax.f32 %v1160, 0.0
        %1165 = vrot.lane.b32.xlu0 %v1090, 96
        %v1166 = vpop.permute.xlu0 %1165
        %1168 = vmatprep.subr.mxu0 0.0
        %1169 = vmatpush1.msra.mxu0 %v1166
        %1170 = vmatprep.subr.mxu0 0.0
        %1171 = vmatpush1.msra.mxu0 0.0
        %1172 = vmatprep.subr.mxu0 0.0
        %1173 = vmatpush1.msra.mxu0 0.0
        %1174 = vmatprep.subr.mxu0 0.0
        %1175 = vmatpush1.msra.mxu0 0.0
        %1176 = vmatprep.subr.mxu0 0.0
        %1177 = vmatpush1.msra.mxu0 0.0
        %1178 = vmatprep.subr.mxu0 0.0
        %1179 = vmatpush1.msra.mxu0 0.0
        %1180 = vmatprep.subr.mxu0 0.0
        %1181 = vmatpush1.msra.mxu0 0.0
        %1182 = vmatprep.subr.mxu0 0.0
        %1183 = vmatpush1.msra.mxu0 0.0
        %1184 = vmatprep.subr.mxu0 0.0
        %1185 = vmatpush1.msra.mxu0 0.0
        %1186 = vmatprep.subr.mxu0 0.0
        %1187 = vmatpush1.msra.mxu0 0.0
        %1188 = vmatprep.subr.mxu0 0.0
        %1189 = vmatpush1.msra.mxu0 0.0
        %1190 = vmatprep.subr.mxu0 0.0
        %1191 = vmatpush1.msra.mxu0 0.0
        %1192 = vmatprep.subr.mxu0 0.0
        %1193 = vmatpush1.msra.mxu0 0.0
        %1194 = vmatprep.subr.mxu0 0.0
        %1195 = vmatpush1.msra.mxu0 0.0
        %1196 = vmatprep.subr.mxu0 0.0
        %1197 = vmatpush1.msra.mxu0 0.0
        %1198 = vmatprep.subr.mxu0 0.0
        %1199 = vmatpush1.msra.mxu0 0.0
        %1200 = vmatprep.subr.mxu0 0.0
        %1201 = vmatpush1.msra.mxu0 0.0
        %1202 = vmatprep.subr.mxu0 0.0
        %1203 = vmatpush1.msra.mxu0 0.0
        %1204 = vmatprep.subr.mxu0 0.0
        %1205 = vmatpush1.msra.mxu0 0.0
        %1206 = vmatprep.subr.mxu0 0.0
        %1207 = vmatpush1.msra.mxu0 0.0
        %1208 = vmatprep.subr.mxu0 0.0
        %1209 = vmatpush1.msra.mxu0 0.0
        %1210 = vmatprep.subr.mxu0 0.0
        %1211 = vmatpush1.msra.mxu0 0.0
        %1212 = vmatprep.subr.mxu0 0.0
        %1213 = vmatpush1.msra.mxu0 0.0
        %1214 = vmatprep.subr.mxu0 0.0
        %1215 = vmatpush1.msra.mxu0 0.0
        %1216 = vmatprep.subr.mxu0 0.0
        %1217 = vmatpush1.msra.mxu0 0.0
        %1218 = vmatprep.subr.mxu0 0.0
        %1219 = vmatpush1.msra.mxu0 0.0
        %1220 = vmatprep.subr.mxu0 0.0
        %1221 = vmatpush1.msra.mxu0 0.0
        %1222 = vmatprep.subr.mxu0 0.0
        %1223 = vmatpush1.msra.mxu0 0.0
        %1224 = vmatprep.subr.mxu0 0.0
        %1225 = vmatpush1.msra.mxu0 0.0
        %1226 = vmatprep.subr.mxu0 0.0
        %1227 = vmatpush1.msra.mxu0 0.0
        %1228 = vmatprep.subr.mxu0 0.0
        %1229 = vmatpush1.msra.mxu0 0.0
        %1230 = vmatprep.subr.mxu0 0.0
        %1231 = vmatpush1.msra.mxu0 0.0
        %1232 = vmatprep.mubr.f32.mxu0 0.0
        %1233 = vmatmul.mubr.f32.gmra.mrb[0].mxu0 %v794
        %v1234 = vpop.f32.mrb[0].mxu0
        %v1235 = vadd.f32 0.0, %v1234
        %v1236 = vpop.f32.mrb[0].mxu0
        %1237 = vdwg.mxu0
        %v1238 = vmax.f32 %v1235, 0.0
        %v1239 = vadd.f32 %v1163, %v1238
        %v1240 = vld [vmem:[#allocation13] sm:$0xff]
        %v1241 = vld [vmem:[#allocation13 + $0x8] sm:$0xff]
        %v1242 = vld [vmem:[#allocation13 + $0x10] sm:$0xff]
        %v1243 = vld [vmem:[#allocation13 + $0x18] sm:$0xff]
        %v1245 = vsel %vm475, %v1015, 0
        %1247 = vmatprep.subr.mxu0 0.0
        %1248 = vmatpush1.msra.mxu0 %v1240
        %1249 = vmatprep.subr.mxu0 0.0
        %1250 = vmatpush1.msra.mxu0 %v1241
        %1251 = vmatprep.subr.mxu0 0.0
        %1252 = vmatpush1.msra.mxu0 %v1242
        %1253 = vmatprep.subr.mxu0 0.0
        %1254 = vmatpush1.msra.mxu0 %v1243
        %1255 = vmatprep.subr.mxu0 0.0
        %1256 = vmatpush1.msra.mxu0 0.0
        %1257 = vmatprep.subr.mxu0 0.0
        %1258 = vmatpush1.msra.mxu0 0.0
        %1259 = vmatprep.subr.mxu0 0.0
        %1260 = vmatpush1.msra.mxu0 0.0
        %1261 = vmatprep.subr.mxu0 0.0
        %1262 = vmatpush1.msra.mxu0 0.0
        %1263 = vmatprep.subr.mxu0 0.0
        %1264 = vmatpush1.msra.mxu0 0.0
        %1265 = vmatprep.subr.mxu0 0.0
        %1266 = vmatpush1.msra.mxu0 0.0
        %1267 = vmatprep.subr.mxu0 0.0
        %1268 = vmatpush1.msra.mxu0 0.0
        %1269 = vmatprep.subr.mxu0 0.0
        %1270 = vmatpush1.msra.mxu0 0.0
        %1271 = vmatprep.subr.mxu0 0.0
        %1272 = vmatpush1.msra.mxu0 0.0
        %1273 = vmatprep.subr.mxu0 0.0
        %1274 = vmatpush1.msra.mxu0 0.0
        %1275 = vmatprep.subr.mxu0 0.0
        %1276 = vmatpush1.msra.mxu0 0.0
        %1277 = vmatprep.subr.mxu0 0.0
        %1278 = vmatpush1.msra.mxu0 0.0
        %1279 = vmatprep.subr.mxu0 0.0
        %1280 = vmatpush1.msra.mxu0 0.0
        %1281 = vmatprep.subr.mxu0 0.0
        %1282 = vmatpush1.msra.mxu0 0.0
        %1283 = vmatprep.subr.mxu0 0.0
        %1284 = vmatpush1.msra.mxu0 0.0
        %1285 = vmatprep.subr.mxu0 0.0
        %1286 = vmatpush1.msra.mxu0 0.0
        %1287 = vmatprep.subr.mxu0 0.0
        %1288 = vmatpush1.msra.mxu0 0.0
        %1289 = vmatprep.subr.mxu0 0.0
        %1290 = vmatpush1.msra.mxu0 0.0
        %1291 = vmatprep.subr.mxu0 0.0
        %1292 = vmatpush1.msra.mxu0 0.0
        %1293 = vmatprep.subr.mxu0 0.0
        %1294 = vmatpush1.msra.mxu0 0.0
        %1295 = vmatprep.subr.mxu0 0.0
        %1296 = vmatpush1.msra.mxu0 0.0
        %1297 = vmatprep.subr.mxu0 0.0
        %1298 = vmatpush1.msra.mxu0 0.0
        %1299 = vmatprep.subr.mxu0 0.0
        %1300 = vmatpush1.msra.mxu0 0.0
        %1301 = vmatprep.subr.mxu0 0.0
        %1302 = vmatpush1.msra.mxu0 0.0
        %1303 = vmatprep.subr.mxu0 0.0
        %1304 = vmatpush1.msra.mxu0 0.0
        %1305 = vmatprep.subr.mxu0 0.0
        %1306 = vmatpush1.msra.mxu0 0.0
        %1307 = vmatprep.subr.mxu0 0.0
        %1308 = vmatpush1.msra.mxu0 0.0
        %1309 = vmatprep.subr.mxu0 0.0
        %1310 = vmatpush1.msra.mxu0 0.0
        %1311 = vmatprep.mubr.f32.mxu0 0.0
        %1312 = vmatmul.mubr.f32.gmra.mrb[0].mxu0 %v1245
        %v1313 = vpop.f32.mrb[0].mxu0
        %v1314 = vadd.f32 0.0, %v1313
        %v1315 = vpop.f32.mrb[0].mxu0
        %1316 = vdwg.mxu0
        %1317 = vmatprep.subr.mxu0 0.0
        %1318 = vmatpush1.msra.mxu0 %v1314
        %1319 = vmatprep.subr.mxu0 0.0
        %1320 = vmatpush1.msra.mxu0 0.0
        %1321 = vmatprep.subr.mxu0 0.0
        %1322 = vmatpush1.msra.mxu0 0.0
        %1323 = vmatprep.subr.mxu0 0.0
        %1324 = vmatpush1.msra.mxu0 0.0
        %1325 = vmatprep.subr.mxu0 0.0
        %1326 = vmatpush1.msra.mxu0 0.0
        %1327 = vmatprep.subr.mxu0 0.0
        %1328 = vmatpush1.msra.mxu0 0.0
        %1329 = vmatprep.subr.mxu0 0.0
        %1330 = vmatpush1.msra.mxu0 0.0
        %1331 = vmatprep.subr.mxu0 0.0
        %1332 = vmatpush1.msra.mxu0 0.0
        %1333 = vmatprep.subr.mxu0 0.0
        %1334 = vmatpush1.msra.mxu0 0.0
        %1335 = vmatprep.subr.mxu0 0.0
        %1336 = vmatpush1.msra.mxu0 0.0
        %1337 = vmatprep.subr.mxu0 0.0
        %1338 = vmatpush1.msra.mxu0 0.0
        %1339 = vmatprep.subr.mxu0 0.0
        %1340 = vmatpush1.msra.mxu0 0.0
        %1341 = vmatprep.subr.mxu0 0.0
        %1342 = vmatpush1.msra.mxu0 0.0
        %1343 = vmatprep.subr.mxu0 0.0
        %1344 = vmatpush1.msra.mxu0 0.0
        %1345 = vmatprep.subr.mxu0 0.0
        %1346 = vmatpush1.msra.mxu0 0.0
        %1347 = vmatprep.subr.mxu0 0.0
        %1348 = vmatpush1.msra.mxu0 0.0
        %1349 = vmatprep.subr.mxu0 0.0
        %1350 = vmatpush1.msra.mxu0 0.0
        %1351 = vmatprep.subr.mxu0 0.0
        %1352 = vmatpush1.msra.mxu0 0.0
        %1353 = vmatprep.subr.mxu0 0.0
        %1354 = vmatpush1.msra.mxu0 0.0
        %1355 = vmatprep.subr.mxu0 0.0
        %1356 = vmatpush1.msra.mxu0 0.0
        %1357 = vmatprep.subr.mxu0 0.0
        %1358 = vmatpush1.msra.mxu0 0.0
        %1359 = vmatprep.subr.mxu0 0.0
        %1360 = vmatpush1.msra.mxu0 0.0
        %1361 = vmatprep.subr.mxu0 0.0
        %1362 = vmatpush1.msra.mxu0 0.0
        %1363 = vmatprep.subr.mxu0 0.0
        %1364 = vmatpush1.msra.mxu0 0.0
        %1365 = vmatprep.subr.mxu0 0.0
        %1366 = vmatpush1.msra.mxu0 0.0
        %1367 = vmatprep.subr.mxu0 0.0
        %1368 = vmatpush1.msra.mxu0 0.0
        %1369 = vmatprep.subr.mxu0 0.0
        %1370 = vmatpush1.msra.mxu0 0.0
        %1371 = vmatprep.subr.mxu0 0.0
        %1372 = vmatpush1.msra.mxu0 0.0
        %1373 = vmatprep.subr.mxu0 0.0
        %1374 = vmatpush1.msra.mxu0 0.0
        %1375 = vmatprep.subr.mxu0 0.0
        %1376 = vmatpush1.msra.mxu0 0.0
        %1377 = vmatprep.subr.mxu0 0.0
        %1378 = vmatpush1.msra.mxu0 0.0
        %1379 = vmatprep.subr.mxu0 0.0
        %1380 = vmatpush1.msra.mxu0 0.0
        %1381 = vmatprep.mubr.f32.mxu0 0.0
        %1382 = vmatmul.mubr.f32.gmra.mrb[0].mxu0 %v643
        %v1383 = vpop.f32.mrb[0].mxu0
        %v1384 = vadd.f32 0.0, %v1383
        %v1385 = vpop.f32.mrb[0].mxu0
        %1386 = vdwg.mxu0
        %v1387 = vmax.f32 %v1384, 0.0
        %v1388 = vld [vmem:[#allocation14] sm:$0xff]
        %v1389 = vld [vmem:[#allocation14 + $0x8] sm:$0xff]
        %v1390 = vld [vmem:[#allocation14 + $0x10] sm:$0xff]
        %v1391 = vld [vmem:[#allocation14 + $0x18] sm:$0xff]
        %v1393 = vsel %vm475, %v1239, 0
        %1395 = vmatprep.subr.mxu0 0.0
        %1396 = vmatpush1.msra.mxu0 %v1388
        %1397 = vmatprep.subr.mxu0 0.0
        %1398 = vmatpush1.msra.mxu0 %v1389
        %1399 = vmatprep.subr.mxu0 0.0
        %1400 = vmatpush1.msra.mxu0 %v1390
        %1401 = vmatprep.subr.mxu0 0.0
        %1402 = vmatpush1.msra.mxu0 %v1391
        %1403 = vmatprep.subr.mxu0 0.0
        %1404 = vmatpush1.msra.mxu0 0.0
        %1405 = vmatprep.subr.mxu0 0.0
        %1406 = vmatpush1.msra.mxu0 0.0
        %1407 = vmatprep.subr.mxu0 0.0
        %1408 = vmatpush1.msra.mxu0 0.0
        %1409 = vmatprep.subr.mxu0 0.0
        %1410 = vmatpush1.msra.mxu0 0.0
        %1411 = vmatprep.subr.mxu0 0.0
        %1412 = vmatpush1.msra.mxu0 0.0
        %1413 = vmatprep.subr.mxu0 0.0
        %1414 = vmatpush1.msra.mxu0 0.0
        %1415 = vmatprep.subr.mxu0 0.0
        %1416 = vmatpush1.msra.mxu0 0.0
        %1417 = vmatprep.subr.mxu0 0.0
        %1418 = vmatpush1.msra.mxu0 0.0
        %1419 = vmatprep.subr.mxu0 0.0
        %1420 = vmatpush1.msra.mxu0 0.0
        %1421 = vmatprep.subr.mxu0 0.0
        %1422 = vmatpush1.msra.mxu0 0.0
        %1423 = vmatprep.subr.mxu0 0.0
        %1424 = vmatpush1.msra.mxu0 0.0
        %1425 = vmatprep.subr.mxu0 0.0
        %1426 = vmatpush1.msra.mxu0 0.0
        %1427 = vmatprep.subr.mxu0 0.0
        %1428 = vmatpush1.msra.mxu0 0.0
        %1429 = vmatprep.subr.mxu0 0.0
        %1430 = vmatpush1.msra.mxu0 0.0
        %1431 = vmatprep.subr.mxu0 0.0
        %1432 = vmatpush1.msra.mxu0 0.0
        %1433 = vmatprep.subr.mxu0 0.0
        %1434 = vmatpush1.msra.mxu0 0.0
        %1435 = vmatprep.subr.mxu0 0.0
        %1436 = vmatpush1.msra.mxu0 0.0
        %1437 = vmatprep.subr.mxu0 0.0
        %1438 = vmatpush1.msra.mxu0 0.0
        %1439 = vmatprep.subr.mxu0 0.0
        %1440 = vmatpush1.msra.mxu0 0.0
        %1441 = vmatprep.subr.mxu0 0.0
        %1442 = vmatpush1.msra.mxu0 0.0
        %1443 = vmatprep.subr.mxu0 0.0
        %1444 = vmatpush1.msra.mxu0 0.0
        %1445 = vmatprep.subr.mxu0 0.0
        %1446 = vmatpush1.msra.mxu0 0.0
        %1447 = vmatprep.subr.mxu0 0.0
        %1448 = vmatpush1.msra.mxu0 0.0
        %1449 = vmatprep.subr.mxu0 0.0
        %1450 = vmatpush1.msra.mxu0 0.0
        %1451 = vmatprep.subr.mxu0 0.0
        %1452 = vmatpush1.msra.mxu0 0.0
        %1453 = vmatprep.subr.mxu0 0.0
        %1454 = vmatpush1.msra.mxu0 0.0
        %1455 = vmatprep.subr.mxu0 0.0
        %1456 = vmatpush1.msra.mxu0 0.0
        %1457 = vmatprep.subr.mxu0 0.0
        %1458 = vmatpush1.msra.mxu0 0.0
        %1459 = vmatprep.mubr.f32.mxu0 0.0
        %1460 = vmatmul.mubr.f32.gmra.mrb[0].mxu0 %v1393
        %v1461 = vpop.f32.mrb[0].mxu0
        %v1462 = vadd.f32 0.0, %v1461
        %v1463 = vpop.f32.mrb[0].mxu0
        %1464 = vdwg.mxu0
        %1465 = vmatprep.subr.mxu0 0.0
        %1466 = vmatpush1.msra.mxu0 %v1462
        %1467 = vmatprep.subr.mxu0 0.0
        %1468 = vmatpush1.msra.mxu0 0.0
        %1469 = vmatprep.subr.mxu0 0.0
        %1470 = vmatpush1.msra.mxu0 0.0
        %1471 = vmatprep.subr.mxu0 0.0
        %1472 = vmatpush1.msra.mxu0 0.0
        %1473 = vmatprep.subr.mxu0 0.0
        %1474 = vmatpush1.msra.mxu0 0.0
        %1475 = vmatprep.subr.mxu0 0.0
        %1476 = vmatpush1.msra.mxu0 0.0
        %1477 = vmatprep.subr.mxu0 0.0
        %1478 = vmatpush1.msra.mxu0 0.0
        %1479 = vmatprep.subr.mxu0 0.0
        %1480 = vmatpush1.msra.mxu0 0.0
        %1481 = vmatprep.subr.mxu0 0.0
        %1482 = vmatpush1.msra.mxu0 0.0
        %1483 = vmatprep.subr.mxu0 0.0
        %1484 = vmatpush1.msra.mxu0 0.0
        %1485 = vmatprep.subr.mxu0 0.0
        %1486 = vmatpush1.msra.mxu0 0.0
        %1487 = vmatprep.subr.mxu0 0.0
        %1488 = vmatpush1.msra.mxu0 0.0
        %1489 = vmatprep.subr.mxu0 0.0
        %1490 = vmatpush1.msra.mxu0 0.0
        %1491 = vmatprep.subr.mxu0 0.0
        %1492 = vmatpush1.msra.mxu0 0.0
        %1493 = vmatprep.subr.mxu0 0.0
        %1494 = vmatpush1.msra.mxu0 0.0
        %1495 = vmatprep.subr.mxu0 0.0
        %1496 = vmatpush1.msra.mxu0 0.0
        %1497 = vmatprep.subr.mxu0 0.0
        %1498 = vmatpush1.msra.mxu0 0.0
        %1499 = vmatprep.subr.mxu0 0.0
        %1500 = vmatpush1.msra.mxu0 0.0
        %1501 = vmatprep.subr.mxu0 0.0
        %1502 = vmatpush1.msra.mxu0 0.0
        %1503 = vmatprep.subr.mxu0 0.0
        %1504 = vmatpush1.msra.mxu0 0.0
        %1505 = vmatprep.subr.mxu0 0.0
        %1506 = vmatpush1.msra.mxu0 0.0
        %1507 = vmatprep.subr.mxu0 0.0
        %1508 = vmatpush1.msra.mxu0 0.0
        %1509 = vmatprep.subr.mxu0 0.0
        %1510 = vmatpush1.msra.mxu0 0.0
        %1511 = vmatprep.subr.mxu0 0.0
        %1512 = vmatpush1.msra.mxu0 0.0
        %1513 = vmatprep.subr.mxu0 0.0
        %1514 = vmatpush1.msra.mxu0 0.0
        %1515 = vmatprep.subr.mxu0 0.0
        %1516 = vmatpush1.msra.mxu0 0.0
        %1517 = vmatprep.subr.mxu0 0.0
        %1518 = vmatpush1.msra.mxu0 0.0
        %1519 = vmatprep.subr.mxu0 0.0
        %1520 = vmatpush1.msra.mxu0 0.0
        %1521 = vmatprep.subr.mxu0 0.0
        %1522 = vmatpush1.msra.mxu0 0.0
        %1523 = vmatprep.subr.mxu0 0.0
        %1524 = vmatpush1.msra.mxu0 0.0
        %1525 = vmatprep.subr.mxu0 0.0
        %1526 = vmatpush1.msra.mxu0 0.0
        %1527 = vmatprep.subr.mxu0 0.0
        %1528 = vmatpush1.msra.mxu0 0.0
        %1529 = vmatprep.mubr.f32.mxu0 0.0
        %1530 = vmatmul.mubr.f32.gmra.mrb[0].mxu0 %v720
        %v1531 = vpop.f32.mrb[0].mxu0
        %v1532 = vadd.f32 0.0, %v1531
        %v1533 = vpop.f32.mrb[0].mxu0
        %1534 = vdwg.mxu0
        %v1535 = vmax.f32 %v1532, 0.0
        %1537 = vrot.lane.b32.xlu0 %v1462, 96
        %v1538 = vpop.permute.xlu0 %1537
        %1540 = vmatprep.subr.mxu0 0.0
        %1541 = vmatpush1.msra.mxu0 %v1538
        %1542 = vmatprep.subr.mxu0 0.0
        %1543 = vmatpush1.msra.mxu0 0.0
        %1544 = vmatprep.subr.mxu0 0.0
        %1545 = vmatpush1.msra.mxu0 0.0
        %1546 = vmatprep.subr.mxu0 0.0
        %1547 = vmatpush1.msra.mxu0 0.0
        %1548 = vmatprep.subr.mxu0 0.0
        %1549 = vmatpush1.msra.mxu0 0.0
        %1550 = vmatprep.subr.mxu0 0.0
        %1551 = vmatpush1.msra.mxu0 0.0
        %1552 = vmatprep.subr.mxu0 0.0
        %1553 = vmatpush1.msra.mxu0 0.0
        %1554 = vmatprep.subr.mxu0 0.0
        %1555 = vmatpush1.msra.mxu0 0.0
        %1556 = vmatprep.subr.mxu0 0.0
        %1557 = vmatpush1.msra.mxu0 0.0
        %1558 = vmatprep.subr.mxu0 0.0
        %1559 = vmatpush1.msra.mxu0 0.0
        %1560 = vmatprep.subr.mxu0 0.0
        %1561 = vmatpush1.msra.mxu0 0.0
        %1562 = vmatprep.subr.mxu0 0.0
        %1563 = vmatpush1.msra.mxu0 0.0
        %1564 = vmatprep.subr.mxu0 0.0
        %1565 = vmatpush1.msra.mxu0 0.0
        %1566 = vmatprep.subr.mxu0 0.0
        %1567 = vmatpush1.msra.mxu0 0.0
        %1568 = vmatprep.subr.mxu0 0.0
        %1569 = vmatpush1.msra.mxu0 0.0
        %1570 = vmatprep.subr.mxu0 0.0
        %1571 = vmatpush1.msra.mxu0 0.0
        %1572 = vmatprep.subr.mxu0 0.0
        %1573 = vmatpush1.msra.mxu0 0.0
        %1574 = vmatprep.subr.mxu0 0.0
        %1575 = vmatpush1.msra.mxu0 0.0
        %1576 = vmatprep.subr.mxu0 0.0
        %1577 = vmatpush1.msra.mxu0 0.0
        %1578 = vmatprep.subr.mxu0 0.0
        %1579 = vmatpush1.msra.mxu0 0.0
        %1580 = vmatprep.subr.mxu0 0.0
        %1581 = vmatpush1.msra.mxu0 0.0
        %1582 = vmatprep.subr.mxu0 0.0
        %1583 = vmatpush1.msra.mxu0 0.0
        %1584 = vmatprep.subr.mxu0 0.0
        %1585 = vmatpush1.msra.mxu0 0.0
        %1586 = vmatprep.subr.mxu0 0.0
        %1587 = vmatpush1.msra.mxu0 0.0
        %1588 = vmatprep.subr.mxu0 0.0
        %1589 = vmatpush1.msra.mxu0 0.0
        %1590 = vmatprep.subr.mxu0 0.0
        %1591 = vmatpush1.msra.mxu0 0.0
        %1592 = vmatprep.subr.mxu0 0.0
        %1593 = vmatpush1.msra.mxu0 0.0
        %1594 = vmatprep.subr.mxu0 0.0
        %1595 = vmatpush1.msra.mxu0 0.0
        %1596 = vmatprep.subr.mxu0 0.0
        %1597 = vmatpush1.msra.mxu0 0.0
        %1598 = vmatprep.subr.mxu0 0.0
        %1599 = vmatpush1.msra.mxu0 0.0
        %1600 = vmatprep.subr.mxu0 0.0
        %1601 = vmatpush1.msra.mxu0 0.0
        %1602 = vmatprep.subr.mxu0 0.0
        %1603 = vmatpush1.msra.mxu0 0.0
        %1604 = vmatprep.mubr.f32.mxu0 0.0
        %1605 = vmatmul.mubr.f32.gmra.mrb[0].mxu0 %v794
        %v1606 = vpop.f32.mrb[0].mxu0
        %v1607 = vadd.f32 0.0, %v1606
        %v1608 = vpop.f32.mrb[0].mxu0
        %1609 = vdwg.mxu0
        %v1610 = vmax.f32 %v1607, 0.0
        %v1611 = vadd.f32 %v1535, %v1610
        %v1612 = vadd.f32 %v1387, %v1611
        %v1613 = vsel %vm475, %v1612, 0.0
        %v1614 = vrot.slane %v1613, 4
        %v1615 = vadd.f32 %v1613, %v1614
        %v1616 = vrot.slane %v1615, 2
        %v1617 = vadd.f32 %v1615, %v1616
        %v1618 = vrot.slane %v1617, 1
        %v1619 = vadd.f32 %v1617, %v1618
        %v1620 = vrcp.pop 8.0
        %v1621 = vmul.f32 %v1619, %v1620
        %vm1622 = vcmask 253952
        %1623 = vst.msk [vmem:[%s463] sm:$0x1] %vm1622, %v1621
        %s1624 = sand.u32 %s222, 1
        %s1625 = scalar_lea.sflag [#allocation4], %s1624
        %s1626 = sand.u32 %s222, 1
        %s1627 = scalar_lea.vmem [#allocation16], %s1626
        // Predicated region
        $region85: #{tpu_custom_call.1} parent=51 // pred_check
          %p1628 = pneg %p232
        $region86: #{tpu_custom_call.1} parent=51 // pred_check_branch
          %1630 = sbr.rel (%p1628) target = $region88
        $region87: #{tpu_custom_call.1} parent=51 // pred_region
          %s1632 = ssub.s32 16, 16
          %1633 = vsyncadd %s1625, %s1632
          %s1634 = smul.addr %s31, 16
          %s1635 = scalar_lea.hbm %s8, %s1634
          %s1637 = sshll.u32 %s1627, 4
          %s1638 = int_to_ptr.vmem [resolvable:$true] %s1637
          %1640 = dma.vmem_to_hbm [thread:$0]  %s1638, 16, %s1635, %s1625
        $region88: #{tpu_custom_call.1} parent=51 // pred_fallthru
          _
      $region52: #{tpu_custom_call.1} parent=5 // pred_fallthru
        _
      %p1641 = scmp.le.s32.totalorder 2, %s26
      // Predicated region
      $region89: #{tpu_custom_call.1} parent=5 // pred_check
        %p1642 = pneg %p1641
      $region90: #{tpu_custom_call.1} parent=5 // pred_check_branch
        %1644 = sbr.rel (%p1642) target = $region92
      $region91: #{tpu_custom_call.1} parent=5 // pred_region
        %s1645 = ssub.s32 %s26, 2
        // Predicated region
        $region93: #{tpu_custom_call.1} parent=91 // pred_check
          %p1646 = pneg %p238
        $region94: #{tpu_custom_call.1} parent=91 // pred_check_branch
          %1648 = sbr.rel (%p1646) target = $region96
        $region95: #{tpu_custom_call.1} parent=91 // pred_region
          %s1649 = sand.u32 %s223, 1
          %s1650 = scalar_lea.sflag [#allocation4], %s1649
          %s1651 = sand.u32 %s223, 1
          %s1652 = scalar_lea.vmem [#allocation16], %s1651
          %1653 = dma.done %s1650, 16
        $region96: #{tpu_custom_call.1} parent=91 // pred_fallthru
          _
      $region92: #{tpu_custom_call.1} parent=5 // pred_fallthru
        _
    $region6: #{tpu_custom_call.1} parent=1 // loop_footer
      %s30 = sadd.s32 1, %s26
    $region7: #{tpu_custom_call.1} parent=1 // loop_footer_branch
      %25 = sbr.rel target = $region3
    $region8: #{tpu_custom_call.1} parent=1 // loop_exit
      _
    %1654 = vsyncpa [#allocation3], 1
    %s1655 = scalar_lea.sflag [#allocation3], 1
    %1656 = vsyncpa %s1655, 1
    %1657 = vsyncpa [#allocation6], 1
    %s1658 = scalar_lea.sflag [#allocation6], 1
    %1659 = vsyncpa %s1658, 1
    %1660 = vsyncpa [#allocation9], 1
    %1661 = vsyncpa [#allocation12], 1
    %1662 = vsyncpa [#allocation15], 1
    %1663 = vsyncpa [#allocation4], 1
    %s1664 = scalar_lea.sflag [#allocation4], 1
    %1665 = vsyncpa %s1664, 1

</llo_original>
